<compile_context>
chip_gen: v7x
topology: tpu7x:2x2x1
jax: 0.10.0
libtpu: 0.0.40
codegen_flags: <defaults>
</compile_context>

<pallas_src>
import jax
import jax.numpy as jnp
from jax.experimental import pallas as pl
from jax.experimental.pallas import tpu as pltpu


def _se_conv1x1_kernel(gate_ref, w_ref, x_ref, o_ref):
    """SE gate folded into the 1x1-conv weight, single matmul.

    gate_ref: (1, C_in)      f32  raw SE logits (sigmoid applied in-kernel, EUP)
    w_ref:    (C_out, C_in)  bf16 1x1-conv weight (contiguous view of OIHW)
    x_ref:    (C_in, HW)     f32  channel-major feature map (free view of NCHW, N==1)
    o_ref:    (C_out, HW)    f32  output, already in NCHW order for N == 1
    """
    g = jax.nn.sigmoid(gate_ref[...])                       # (1, C_in), EUP
    # Fold the diagonal gate into the weight: sublane broadcast of a lane-dense row.
    w_scaled = w_ref[...].astype(jnp.float32) * g           # (C_out, C_in)
    o_ref[...] = jnp.dot(
        w_scaled, x_ref[...], preferred_element_type=jnp.float32
    ).astype(o_ref.dtype)


@jax.jit
def se_gated_conv1x1(x_nchw, gate_nc11, w_oi11):
    """sigmoid(gate) * x followed by 1x1 conv (no bias). NCHW at the boundary."""
    n, c_in, h, wdt = x_nchw.shape
    c_out = w_oi11.shape[0]
    # Channel-major single-block formulation assumes batch == 1 (as in the module).
    assert n == 1, "kernel assumes batch == 1 (gate broadcast is per-batch)"
    assert gate_nc11.shape == (n, c_in, 1, 1)
    assert w_oi11.shape == (c_out, c_in, 1, 1)

    hw = h * wdt
    x_khw = x_nchw.reshape(c_in, hw)          # free view (N == 1, NCHW contiguous)
    gate_1k = gate_nc11.reshape(1, c_in)      # lane-dense gate: one contiguous 6 KiB DMA
    # bf16 weight halves the dominant HBM transfer; constant-folds in a real model.
    w_nk = w_oi11.reshape(c_out, c_in).astype(jnp.bfloat16)

    bytes_accessed = (
        gate_1k.size * 4 + w_nk.size * 2 + x_khw.size * 4 + c_out * hw * 4
    )

    # Single grid step, all operands fully resident in VMEM (no grid, no scratch).
    out = pl.pallas_call(
        _se_conv1x1_kernel,
        out_shape=jax.ShapeDtypeStruct((c_out, hw), x_nchw.dtype),
        in_specs=[
            pl.BlockSpec(memory_space=pltpu.MemorySpace.VMEM),  # gate
            pl.BlockSpec(memory_space=pltpu.MemorySpace.VMEM),  # weight (bf16)
            pl.BlockSpec(memory_space=pltpu.MemorySpace.VMEM),  # x
        ],
        out_specs=pl.BlockSpec(memory_space=pltpu.MemorySpace.VMEM),
        cost_estimate=pl.CostEstimate(
            flops=2 * c_out * c_in * hw,
            transcendentals=c_in,
            bytes_accessed=bytes_accessed,
        ),
    )(gate_1k, w_nk, x_khw)

    return out.reshape(n, c_out, h, wdt)      # free view back to NCHW


def _reference(x_nchw, gate_nc11, w_oi11):
    """Pure-JAX f32 reference matching the PyTorch module."""
    gated = jax.nn.sigmoid(gate_nc11) * x_nchw
    return jax.lax.conv_general_dilated(
        gated, w_oi11, window_strides=(1, 1), padding="VALID",
        dimension_numbers=("NCHW", "OIHW", "NCHW"),
        precision=jax.lax.Precision.HIGHEST)


if __name__ == "__main__":
    key = jax.random.PRNGKey(0)
    k1, k2, k3 = jax.random.split(key, 3)

    N, C_IN, H, W = 1, 1536, 7, 7
    C_OUT = 256

    x337 = jax.random.normal(k1, (N, C_IN, H, W), dtype=jnp.float32)
    x341 = jax.random.normal(k2, (N, C_IN, 1, 1), dtype=jnp.float32)
    w = jax.random.normal(k3, (C_OUT, C_IN, 1, 1), dtype=jnp.float32) * (
        1.0 / jnp.sqrt(C_IN)
    )

    out = jax.block_until_ready(se_gated_conv1x1(x337, x341, w))
    ref = jax.block_until_ready(_reference(x337, x341, w))

    assert out.shape == (N, C_OUT, H, W), out.shape
    # Tolerance accounts for the bf16 weight cast (K = 1536, f32 accumulation):
    # expected max abs error is a few 1e-3 against the pure-f32 module reference.
    assert jnp.allclose(out, ref, atol=1e-2, rtol=1e-2), float(
        jnp.max(jnp.abs(out - ref))
    )

    print("KERNEL_OK")
</pallas_src>

<mosaic_0001>
module attributes {stable_mosaic.version = 11 : i64} {
  func.func @_se_conv1x1_kernel(%arg0: memref<1x1536xf32, #tpu.memory_space<vmem>>, %arg1: memref<256x1536xbf16, #tpu.memory_space<vmem>>, %arg2: memref<1536x49xf32, #tpu.memory_space<vmem>>, %arg3: memref<256x49xf32, #tpu.memory_space<vmem>>) attributes {dimension_semantics = [], scalar_prefetch = 0 : i64, scratch_operands = 0 : i64, tpu.core_type = #tpu.core_type<tc>} {
    %c0 = arith.constant 0 : index
    %c0_0 = arith.constant 0 : index
    %0 = vector.load %arg0[%c0, %c0_0] : memref<1x1536xf32, #tpu.memory_space<vmem>>, vector<1x1536xf32>
    %1 = arith.negf %0 : vector<1x1536xf32>
    %2 = math.exp %1 : vector<1x1536xf32>
    %cst = arith.constant 1.000000e+00 : f32
    %3 = vector.broadcast %cst : f32 to vector<1x1536xf32>
    %4 = arith.addf %3, %2 : vector<1x1536xf32>
    %5 = arith.divf %3, %4 : vector<1x1536xf32>
    %c0_1 = arith.constant 0 : index
    %c0_2 = arith.constant 0 : index
    %6 = vector.load %arg1[%c0_1, %c0_2] : memref<256x1536xbf16, #tpu.memory_space<vmem>>, vector<256x1536xbf16>
    %7 = arith.extf %6 : vector<256x1536xbf16> to vector<256x1536xf32>
    %8 = vector.broadcast %5 : vector<1x1536xf32> to vector<256x1536xf32>
    %9 = arith.mulf %7, %8 : vector<256x1536xf32>
    %c0_3 = arith.constant 0 : index
    %c0_4 = arith.constant 0 : index
    %10 = vector.load %arg2[%c0_3, %c0_4] : memref<1536x49xf32, #tpu.memory_space<vmem>>, vector<1536x49xf32>
    %cst_5 = arith.constant dense<0.000000e+00> : vector<256x49xf32>
    %11 = tpu.matmul %9, %10, %cst_5 {dimension_numbers = #tpu.dot_dimension_numbers<[1], [0], [0], [1], [0, 0, 1, 1], [], []>} : vector<256x1536xf32>, vector<1536x49xf32>, vector<256x49xf32> -> vector<256x49xf32>
    %c0_6 = arith.constant 0 : index
    %c0_7 = arith.constant 0 : index
    %12 = vector.load %arg3[%c0_6, %c0_7] : memref<256x49xf32, #tpu.memory_space<vmem>>, vector<256x49xf32>
    tpu.vector_store %arg3[%c0_6, %c0_7], %11 {strides = array<i32>} : memref<256x49xf32, #tpu.memory_space<vmem>>, vector<256x49xf32>,
    return
  }
}

</mosaic_0001>

<llo_original>
// kernel: se_gated_conv1x1.1
$region0: #{se_gated_conv1x1.1}
  #allocation0 [shape = 'u32[]', space=smem, size = 0x4, offset = 0x4, fixed_abs, tag = 'smem constant byte address 0x4 - core index']
  #allocation1 [shape = 'u32[144,128]{1,0:T(1,128)}', space=vmem, size = 0x12000, scoped, tag = 'internal scratch']
  %s0 = inlined_call_operand.vmem [shape: f32[1,1536], index: 0, kind: input, shape index: {}]
  %s1 = inlined_call_operand.vmem [shape: bf16[256,1536], index: 1, kind: input, shape index: {}]
  %s2 = inlined_call_operand.vmem [shape: f32[1536,49], index: 2, kind: input, shape index: {}]
  %s3 = inlined_call_operand.vmem [shape: f32[256,49], index: 3, kind: output, shape index: {}]
  %s4 = sld [smem:[#allocation0]]
  $region22: #{se_gated_conv1x1.1} parent=0
    _
  %s6 = ssub.s32 1, %s4
  %s7 = scalar_select 0, %s6, %s4
  // Predicated region
  $region2: #{se_gated_conv1x1.1} parent=0 // pred_check
    _
  $region3: #{se_gated_conv1x1.1} parent=0 // pred_check_branch
    %9 = sbr.rel (0) target = $region5
  $region4: #{se_gated_conv1x1.1} parent=0 // pred_region
    _
  $region5: #{se_gated_conv1x1.1} parent=0 // pred_fallthru
    _
  // Predicated region
  $region6: #{se_gated_conv1x1.1} parent=0 // pred_check
    _
  $region7: #{se_gated_conv1x1.1} parent=0 // pred_check_branch
    %11 = sbr.rel (0) target = $region9
  $region8: #{se_gated_conv1x1.1} parent=0 // pred_region
    _
  $region9: #{se_gated_conv1x1.1} parent=0 // pred_fallthru
    _
  // Predicated region
  $region10: #{se_gated_conv1x1.1} parent=0 // pred_check
    _
  $region11: #{se_gated_conv1x1.1} parent=0 // pred_check_branch
    %13 = sbr.rel (0) target = $region13
  $region12: #{se_gated_conv1x1.1} parent=0 // pred_region
    _
  $region13: #{se_gated_conv1x1.1} parent=0 // pred_fallthru
    _
  %v14 = vld [vmem:[%s0] sm:$0xff]
  %v15 = vld [vmem:[%s0 + $0x8] sm:$0xf]
  %v16 = vxor.u32 %v14, 2147483648
  %v17 = vxor.u32 %v15, 2147483648
  %v18 = vmul.f32 %v16, 1.442695
  %v19 = vpow.pop %v18
  %v20 = vmul.f32 %v17, 1.442695
  %v21 = vpow.pop %v20
  %v22 = vadd.f32 %v19, 1.0
  %v23 = vadd.f32 %v21, 1.0
  %v24 = vrcp.pop %v22
  %v25 = vmul.f32 1.0, %v24
  %v26 = vrcp.pop %v23
  %v27 = vmul.f32 1.0, %v26
  %v28 = vld [vmem:[%s1] sm:$0xff]
  %v29 = vld [vmem:[%s1 + $0x8] sm:$0xff]
  %v30 = vld [vmem:[%s1 + $0x10] sm:$0xff]
  %v31 = vld [vmem:[%s1 + $0x18] sm:$0xff]
  %v32 = vld [vmem:[%s1 + $0x20] sm:$0xff]
  %v33 = vld [vmem:[%s1 + $0x28] sm:$0xff]
  %v34 = vld [vmem:[%s1 + $0x30] sm:$0xff]
  %v35 = vld [vmem:[%s1 + $0x38] sm:$0xff]
  %v36 = vld [vmem:[%s1 + $0x40] sm:$0xff]
  %v37 = vld [vmem:[%s1 + $0x48] sm:$0xff]
  %v38 = vld [vmem:[%s1 + $0x50] sm:$0xff]
  %v39 = vld [vmem:[%s1 + $0x58] sm:$0xff]
  %v40 = vld [vmem:[%s1 + $0x60] sm:$0xff]
  %v41 = vld [vmem:[%s1 + $0x68] sm:$0xff]
  %v42 = vld [vmem:[%s1 + $0x70] sm:$0xff]
  %v43 = vld [vmem:[%s1 + $0x78] sm:$0xff]
  %v44 = vld [vmem:[%s1 + $0x80] sm:$0xff]
  %v45 = vld [vmem:[%s1 + $0x88] sm:$0xff]
  %v46 = vld [vmem:[%s1 + $0x90] sm:$0xff]
  %v47 = vld [vmem:[%s1 + $0x98] sm:$0xff]
  %v48 = vld [vmem:[%s1 + $0xa0] sm:$0xff]
  %v49 = vld [vmem:[%s1 + $0xa8] sm:$0xff]
  %v50 = vld [vmem:[%s1 + $0xb0] sm:$0xff]
  %v51 = vld [vmem:[%s1 + $0xb8] sm:$0xff]
  %v52 = vld [vmem:[%s1 + $0xc0] sm:$0xff]
  %v53 = vld [vmem:[%s1 + $0xc8] sm:$0xff]
  %v54 = vld [vmem:[%s1 + $0xd0] sm:$0xff]
  %v55 = vld [vmem:[%s1 + $0xd8] sm:$0xff]
  %v56 = vld [vmem:[%s1 + $0xe0] sm:$0xff]
  %v57 = vld [vmem:[%s1 + $0xe8] sm:$0xff]
  %v58 = vld [vmem:[%s1 + $0xf0] sm:$0xff]
  %v59 = vld [vmem:[%s1 + $0xf8] sm:$0xff]
  %v60 = vld [vmem:[%s1 + $0x100] sm:$0xff]
  %v61 = vld [vmem:[%s1 + $0x108] sm:$0xff]
  %v62 = vld [vmem:[%s1 + $0x110] sm:$0xff]
  %v63 = vld [vmem:[%s1 + $0x118] sm:$0xff]
  %v64 = vld [vmem:[%s1 + $0x120] sm:$0xff]
  %v65 = vld [vmem:[%s1 + $0x128] sm:$0xff]
  %v66 = vld [vmem:[%s1 + $0x130] sm:$0xff]
  %v67 = vld [vmem:[%s1 + $0x138] sm:$0xff]
  %v68 = vld [vmem:[%s1 + $0x140] sm:$0xff]
  %v69 = vld [vmem:[%s1 + $0x148] sm:$0xff]
  %v70 = vld [vmem:[%s1 + $0x150] sm:$0xff]
  %v71 = vld [vmem:[%s1 + $0x158] sm:$0xff]
  %v72 = vld [vmem:[%s1 + $0x160] sm:$0xff]
  %v73 = vld [vmem:[%s1 + $0x168] sm:$0xff]
  %v74 = vld [vmem:[%s1 + $0x170] sm:$0xff]
  %v75 = vld [vmem:[%s1 + $0x178] sm:$0xff]
  %v76 = vld [vmem:[%s1 + $0x180] sm:$0xff]
  %v77 = vld [vmem:[%s1 + $0x188] sm:$0xff]
  %v78 = vld [vmem:[%s1 + $0x190] sm:$0xff]
  %v79 = vld [vmem:[%s1 + $0x198] sm:$0xff]
  %v80 = vld [vmem:[%s1 + $0x1a0] sm:$0xff]
  %v81 = vld [vmem:[%s1 + $0x1a8] sm:$0xff]
  %v82 = vld [vmem:[%s1 + $0x1b0] sm:$0xff]
  %v83 = vld [vmem:[%s1 + $0x1b8] sm:$0xff]
  %v84 = vld [vmem:[%s1 + $0x1c0] sm:$0xff]
  %v85 = vld [vmem:[%s1 + $0x1c8] sm:$0xff]
  %v86 = vld [vmem:[%s1 + $0x1d0] sm:$0xff]
  %v87 = vld [vmem:[%s1 + $0x1d8] sm:$0xff]
  %v88 = vld [vmem:[%s1 + $0x1e0] sm:$0xff]
  %v89 = vld [vmem:[%s1 + $0x1e8] sm:$0xff]
  %v90 = vld [vmem:[%s1 + $0x1f0] sm:$0xff]
  %v91 = vld [vmem:[%s1 + $0x1f8] sm:$0xff]
  %v92 = vld [vmem:[%s1 + $0x200] sm:$0xff]
  %v93 = vld [vmem:[%s1 + $0x208] sm:$0xff]
  %v94 = vld [vmem:[%s1 + $0x210] sm:$0xff]
  %v95 = vld [vmem:[%s1 + $0x218] sm:$0xff]
  %v96 = vld [vmem:[%s1 + $0x220] sm:$0xff]
  %v97 = vld [vmem:[%s1 + $0x228] sm:$0xff]
  %v98 = vld [vmem:[%s1 + $0x230] sm:$0xff]
  %v99 = vld [vmem:[%s1 + $0x238] sm:$0xff]
  %v100 = vld [vmem:[%s1 + $0x240] sm:$0xff]
  %v101 = vld [vmem:[%s1 + $0x248] sm:$0xff]
  %v102 = vld [vmem:[%s1 + $0x250] sm:$0xff]
  %v103 = vld [vmem:[%s1 + $0x258] sm:$0xff]
  %v104 = vld [vmem:[%s1 + $0x260] sm:$0xff]
  %v105 = vld [vmem:[%s1 + $0x268] sm:$0xff]
  %v106 = vld [vmem:[%s1 + $0x270] sm:$0xff]
  %v107 = vld [vmem:[%s1 + $0x278] sm:$0xff]
  %v108 = vld [vmem:[%s1 + $0x280] sm:$0xff]
  %v109 = vld [vmem:[%s1 + $0x288] sm:$0xff]
  %v110 = vld [vmem:[%s1 + $0x290] sm:$0xff]
  %v111 = vld [vmem:[%s1 + $0x298] sm:$0xff]
  %v112 = vld [vmem:[%s1 + $0x2a0] sm:$0xff]
  %v113 = vld [vmem:[%s1 + $0x2a8] sm:$0xff]
  %v114 = vld [vmem:[%s1 + $0x2b0] sm:$0xff]
  %v115 = vld [vmem:[%s1 + $0x2b8] sm:$0xff]
  %v116 = vld [vmem:[%s1 + $0x2c0] sm:$0xff]
  %v117 = vld [vmem:[%s1 + $0x2c8] sm:$0xff]
  %v118 = vld [vmem:[%s1 + $0x2d0] sm:$0xff]
  %v119 = vld [vmem:[%s1 + $0x2d8] sm:$0xff]
  %v120 = vld [vmem:[%s1 + $0x2e0] sm:$0xff]
  %v121 = vld [vmem:[%s1 + $0x2e8] sm:$0xff]
  %v122 = vld [vmem:[%s1 + $0x2f0] sm:$0xff]
  %v123 = vld [vmem:[%s1 + $0x2f8] sm:$0xff]
  %v124 = vld [vmem:[%s1 + $0x300] sm:$0xff]
  %v125 = vld [vmem:[%s1 + $0x308] sm:$0xff]
  %v126 = vld [vmem:[%s1 + $0x310] sm:$0xff]
  %v127 = vld [vmem:[%s1 + $0x318] sm:$0xff]
  %v128 = vld [vmem:[%s1 + $0x320] sm:$0xff]
  %v129 = vld [vmem:[%s1 + $0x328] sm:$0xff]
  %v130 = vld [vmem:[%s1 + $0x330] sm:$0xff]
  %v131 = vld [vmem:[%s1 + $0x338] sm:$0xff]
  %v132 = vld [vmem:[%s1 + $0x340] sm:$0xff]
  %v133 = vld [vmem:[%s1 + $0x348] sm:$0xff]
  %v134 = vld [vmem:[%s1 + $0x350] sm:$0xff]
  %v135 = vld [vmem:[%s1 + $0x358] sm:$0xff]
  %v136 = vld [vmem:[%s1 + $0x360] sm:$0xff]
  %v137 = vld [vmem:[%s1 + $0x368] sm:$0xff]
  %v138 = vld [vmem:[%s1 + $0x370] sm:$0xff]
  %v139 = vld [vmem:[%s1 + $0x378] sm:$0xff]
  %v140 = vld [vmem:[%s1 + $0x380] sm:$0xff]
  %v141 = vld [vmem:[%s1 + $0x388] sm:$0xff]
  %v142 = vld [vmem:[%s1 + $0x390] sm:$0xff]
  %v143 = vld [vmem:[%s1 + $0x398] sm:$0xff]
  %v144 = vld [vmem:[%s1 + $0x3a0] sm:$0xff]
  %v145 = vld [vmem:[%s1 + $0x3a8] sm:$0xff]
  %v146 = vld [vmem:[%s1 + $0x3b0] sm:$0xff]
  %v147 = vld [vmem:[%s1 + $0x3b8] sm:$0xff]
  %v148 = vld [vmem:[%s1 + $0x3c0] sm:$0xff]
  %v149 = vld [vmem:[%s1 + $0x3c8] sm:$0xff]
  %v150 = vld [vmem:[%s1 + $0x3d0] sm:$0xff]
  %v151 = vld [vmem:[%s1 + $0x3d8] sm:$0xff]
  %v152 = vld [vmem:[%s1 + $0x3e0] sm:$0xff]
  %v153 = vld [vmem:[%s1 + $0x3e8] sm:$0xff]
  %v154 = vld [vmem:[%s1 + $0x3f0] sm:$0xff]
  %v155 = vld [vmem:[%s1 + $0x3f8] sm:$0xff]
  %v156 = vld [vmem:[%s1 + $0x400] sm:$0xff]
  %v157 = vld [vmem:[%s1 + $0x408] sm:$0xff]
  %v158 = vld [vmem:[%s1 + $0x410] sm:$0xff]
  %v159 = vld [vmem:[%s1 + $0x418] sm:$0xff]
  %v160 = vld [vmem:[%s1 + $0x420] sm:$0xff]
  %v161 = vld [vmem:[%s1 + $0x428] sm:$0xff]
  %v162 = vld [vmem:[%s1 + $0x430] sm:$0xff]
  %v163 = vld [vmem:[%s1 + $0x438] sm:$0xff]
  %v164 = vld [vmem:[%s1 + $0x440] sm:$0xff]
  %v165 = vld [vmem:[%s1 + $0x448] sm:$0xff]
  %v166 = vld [vmem:[%s1 + $0x450] sm:$0xff]
  %v167 = vld [vmem:[%s1 + $0x458] sm:$0xff]
  %v168 = vld [vmem:[%s1 + $0x460] sm:$0xff]
  %v169 = vld [vmem:[%s1 + $0x468] sm:$0xff]
  %v170 = vld [vmem:[%s1 + $0x470] sm:$0xff]
  %v171 = vld [vmem:[%s1 + $0x478] sm:$0xff]
  %v172 = vld [vmem:[%s1 + $0x480] sm:$0xff]
  %v173 = vld [vmem:[%s1 + $0x488] sm:$0xff]
  %v174 = vld [vmem:[%s1 + $0x490] sm:$0xff]
  %v175 = vld [vmem:[%s1 + $0x498] sm:$0xff]
  %v176 = vld [vmem:[%s1 + $0x4a0] sm:$0xff]
  %v177 = vld [vmem:[%s1 + $0x4a8] sm:$0xff]
  %v178 = vld [vmem:[%s1 + $0x4b0] sm:$0xff]
  %v179 = vld [vmem:[%s1 + $0x4b8] sm:$0xff]
  %v180 = vld [vmem:[%s1 + $0x4c0] sm:$0xff]
  %v181 = vld [vmem:[%s1 + $0x4c8] sm:$0xff]
  %v182 = vld [vmem:[%s1 + $0x4d0] sm:$0xff]
  %v183 = vld [vmem:[%s1 + $0x4d8] sm:$0xff]
  %v184 = vld [vmem:[%s1 + $0x4e0] sm:$0xff]
  %v185 = vld [vmem:[%s1 + $0x4e8] sm:$0xff]
  %v186 = vld [vmem:[%s1 + $0x4f0] sm:$0xff]
  %v187 = vld [vmem:[%s1 + $0x4f8] sm:$0xff]
  %v188 = vld [vmem:[%s1 + $0x500] sm:$0xff]
  %v189 = vld [vmem:[%s1 + $0x508] sm:$0xff]
  %v190 = vld [vmem:[%s1 + $0x510] sm:$0xff]
  %v191 = vld [vmem:[%s1 + $0x518] sm:$0xff]
  %v192 = vld [vmem:[%s1 + $0x520] sm:$0xff]
  %v193 = vld [vmem:[%s1 + $0x528] sm:$0xff]
  %v194 = vld [vmem:[%s1 + $0x530] sm:$0xff]
  %v195 = vld [vmem:[%s1 + $0x538] sm:$0xff]
  %v196 = vld [vmem:[%s1 + $0x540] sm:$0xff]
  %v197 = vld [vmem:[%s1 + $0x548] sm:$0xff]
  %v198 = vld [vmem:[%s1 + $0x550] sm:$0xff]
  %v199 = vld [vmem:[%s1 + $0x558] sm:$0xff]
  %v200 = vld [vmem:[%s1 + $0x560] sm:$0xff]
  %v201 = vld [vmem:[%s1 + $0x568] sm:$0xff]
  %v202 = vld [vmem:[%s1 + $0x570] sm:$0xff]
  %v203 = vld [vmem:[%s1 + $0x578] sm:$0xff]
  %v204 = vld [vmem:[%s1 + $0x580] sm:$0xff]
  %v205 = vld [vmem:[%s1 + $0x588] sm:$0xff]
  %v206 = vld [vmem:[%s1 + $0x590] sm:$0xff]
  %v207 = vld [vmem:[%s1 + $0x598] sm:$0xff]
  %v208 = vld [vmem:[%s1 + $0x5a0] sm:$0xff]
  %v209 = vld [vmem:[%s1 + $0x5a8] sm:$0xff]
  %v210 = vld [vmem:[%s1 + $0x5b0] sm:$0xff]
  %v211 = vld [vmem:[%s1 + $0x5b8] sm:$0xff]
  %v212 = vld [vmem:[%s1 + $0x5c0] sm:$0xff]
  %v213 = vld [vmem:[%s1 + $0x5c8] sm:$0xff]
  %v214 = vld [vmem:[%s1 + $0x5d0] sm:$0xff]
  %v215 = vld [vmem:[%s1 + $0x5d8] sm:$0xff]
  %v216 = vld [vmem:[%s1 + $0x5e0] sm:$0xff]
  %v217 = vld [vmem:[%s1 + $0x5e8] sm:$0xff]
  %v218 = vld [vmem:[%s1 + $0x5f0] sm:$0xff]
  %v219 = vld [vmem:[%s1 + $0x5f8] sm:$0xff]
  %v220 = vunpack.c.l.bf16 %v28
  %v221 = vunpack.c.h.bf16 %v28
  %v222 = vunpack.c.l.bf16 %v29
  %v223 = vunpack.c.h.bf16 %v29
  %v224 = vunpack.c.l.bf16 %v30
  %v225 = vunpack.c.h.bf16 %v30
  %v226 = vunpack.c.l.bf16 %v31
  %v227 = vunpack.c.h.bf16 %v31
  %v228 = vunpack.c.l.bf16 %v32
  %v229 = vunpack.c.h.bf16 %v32
  %v230 = vunpack.c.l.bf16 %v33
  %v231 = vunpack.c.h.bf16 %v33
  %v232 = vunpack.c.l.bf16 %v34
  %v233 = vunpack.c.h.bf16 %v34
  %v234 = vunpack.c.l.bf16 %v35
  %v235 = vunpack.c.h.bf16 %v35
  %v236 = vunpack.c.l.bf16 %v36
  %v237 = vunpack.c.h.bf16 %v36
  %v238 = vunpack.c.l.bf16 %v37
  %v239 = vunpack.c.h.bf16 %v37
  %v240 = vunpack.c.l.bf16 %v38
  %v241 = vunpack.c.h.bf16 %v38
  %v242 = vunpack.c.l.bf16 %v39
  %v243 = vunpack.c.h.bf16 %v39
  %v244 = vunpack.c.l.bf16 %v40
  %v245 = vunpack.c.h.bf16 %v40
  %v246 = vunpack.c.l.bf16 %v41
  %v247 = vunpack.c.h.bf16 %v41
  %v248 = vunpack.c.l.bf16 %v42
  %v249 = vunpack.c.h.bf16 %v42
  %v250 = vunpack.c.l.bf16 %v43
  %v251 = vunpack.c.h.bf16 %v43
  %v252 = vunpack.c.l.bf16 %v44
  %v253 = vunpack.c.h.bf16 %v44
  %v254 = vunpack.c.l.bf16 %v45
  %v255 = vunpack.c.h.bf16 %v45
  %v256 = vunpack.c.l.bf16 %v46
  %v257 = vunpack.c.h.bf16 %v46
  %v258 = vunpack.c.l.bf16 %v47
  %v259 = vunpack.c.h.bf16 %v47
  %v260 = vunpack.c.l.bf16 %v48
  %v261 = vunpack.c.h.bf16 %v48
  %v262 = vunpack.c.l.bf16 %v49
  %v263 = vunpack.c.h.bf16 %v49
  %v264 = vunpack.c.l.bf16 %v50
  %v265 = vunpack.c.h.bf16 %v50
  %v266 = vunpack.c.l.bf16 %v51
  %v267 = vunpack.c.h.bf16 %v51
  %v268 = vunpack.c.l.bf16 %v52
  %v269 = vunpack.c.h.bf16 %v52
  %v270 = vunpack.c.l.bf16 %v53
  %v271 = vunpack.c.h.bf16 %v53
  %v272 = vunpack.c.l.bf16 %v54
  %v273 = vunpack.c.h.bf16 %v54
  %v274 = vunpack.c.l.bf16 %v55
  %v275 = vunpack.c.h.bf16 %v55
  %v276 = vunpack.c.l.bf16 %v56
  %v277 = vunpack.c.h.bf16 %v56
  %v278 = vunpack.c.l.bf16 %v57
  %v279 = vunpack.c.h.bf16 %v57
  %v280 = vunpack.c.l.bf16 %v58
  %v281 = vunpack.c.h.bf16 %v58
  %v282 = vunpack.c.l.bf16 %v59
  %v283 = vunpack.c.h.bf16 %v59
  %v284 = vunpack.c.l.bf16 %v60
  %v285 = vunpack.c.h.bf16 %v60
  %v286 = vunpack.c.l.bf16 %v61
  %v287 = vunpack.c.h.bf16 %v61
  %v288 = vunpack.c.l.bf16 %v62
  %v289 = vunpack.c.h.bf16 %v62
  %v290 = vunpack.c.l.bf16 %v63
  %v291 = vunpack.c.h.bf16 %v63
  %v292 = vunpack.c.l.bf16 %v64
  %v293 = vunpack.c.h.bf16 %v64
  %v294 = vunpack.c.l.bf16 %v65
  %v295 = vunpack.c.h.bf16 %v65
  %v296 = vunpack.c.l.bf16 %v66
  %v297 = vunpack.c.h.bf16 %v66
  %v298 = vunpack.c.l.bf16 %v67
  %v299 = vunpack.c.h.bf16 %v67
  %v300 = vunpack.c.l.bf16 %v68
  %v301 = vunpack.c.h.bf16 %v68
  %v302 = vunpack.c.l.bf16 %v69
  %v303 = vunpack.c.h.bf16 %v69
  %v304 = vunpack.c.l.bf16 %v70
  %v305 = vunpack.c.h.bf16 %v70
  %v306 = vunpack.c.l.bf16 %v71
  %v307 = vunpack.c.h.bf16 %v71
  %v308 = vunpack.c.l.bf16 %v72
  %v309 = vunpack.c.h.bf16 %v72
  %v310 = vunpack.c.l.bf16 %v73
  %v311 = vunpack.c.h.bf16 %v73
  %v312 = vunpack.c.l.bf16 %v74
  %v313 = vunpack.c.h.bf16 %v74
  %v314 = vunpack.c.l.bf16 %v75
  %v315 = vunpack.c.h.bf16 %v75
  %v316 = vunpack.c.l.bf16 %v76
  %v317 = vunpack.c.h.bf16 %v76
  %v318 = vunpack.c.l.bf16 %v77
  %v319 = vunpack.c.h.bf16 %v77
  %v320 = vunpack.c.l.bf16 %v78
  %v321 = vunpack.c.h.bf16 %v78
  %v322 = vunpack.c.l.bf16 %v79
  %v323 = vunpack.c.h.bf16 %v79
  %v324 = vunpack.c.l.bf16 %v80
  %v325 = vunpack.c.h.bf16 %v80
  %v326 = vunpack.c.l.bf16 %v81
  %v327 = vunpack.c.h.bf16 %v81
  %v328 = vunpack.c.l.bf16 %v82
  %v329 = vunpack.c.h.bf16 %v82
  %v330 = vunpack.c.l.bf16 %v83
  %v331 = vunpack.c.h.bf16 %v83
  %v332 = vunpack.c.l.bf16 %v84
  %v333 = vunpack.c.h.bf16 %v84
  %v334 = vunpack.c.l.bf16 %v85
  %v335 = vunpack.c.h.bf16 %v85
  %v336 = vunpack.c.l.bf16 %v86
  %v337 = vunpack.c.h.bf16 %v86
  %v338 = vunpack.c.l.bf16 %v87
  %v339 = vunpack.c.h.bf16 %v87
  %v340 = vunpack.c.l.bf16 %v88
  %v341 = vunpack.c.h.bf16 %v88
  %v342 = vunpack.c.l.bf16 %v89
  %v343 = vunpack.c.h.bf16 %v89
  %v344 = vunpack.c.l.bf16 %v90
  %v345 = vunpack.c.h.bf16 %v90
  %v346 = vunpack.c.l.bf16 %v91
  %v347 = vunpack.c.h.bf16 %v91
  %v348 = vunpack.c.l.bf16 %v92
  %v349 = vunpack.c.h.bf16 %v92
  %v350 = vunpack.c.l.bf16 %v93
  %v351 = vunpack.c.h.bf16 %v93
  %v352 = vunpack.c.l.bf16 %v94
  %v353 = vunpack.c.h.bf16 %v94
  %v354 = vunpack.c.l.bf16 %v95
  %v355 = vunpack.c.h.bf16 %v95
  %v356 = vunpack.c.l.bf16 %v96
  %v357 = vunpack.c.h.bf16 %v96
  %v358 = vunpack.c.l.bf16 %v97
  %v359 = vunpack.c.h.bf16 %v97
  %v360 = vunpack.c.l.bf16 %v98
  %v361 = vunpack.c.h.bf16 %v98
  %v362 = vunpack.c.l.bf16 %v99
  %v363 = vunpack.c.h.bf16 %v99
  %v364 = vunpack.c.l.bf16 %v100
  %v365 = vunpack.c.h.bf16 %v100
  %v366 = vunpack.c.l.bf16 %v101
  %v367 = vunpack.c.h.bf16 %v101
  %v368 = vunpack.c.l.bf16 %v102
  %v369 = vunpack.c.h.bf16 %v102
  %v370 = vunpack.c.l.bf16 %v103
  %v371 = vunpack.c.h.bf16 %v103
  %v372 = vunpack.c.l.bf16 %v104
  %v373 = vunpack.c.h.bf16 %v104
  %v374 = vunpack.c.l.bf16 %v105
  %v375 = vunpack.c.h.bf16 %v105
  %v376 = vunpack.c.l.bf16 %v106
  %v377 = vunpack.c.h.bf16 %v106
  %v378 = vunpack.c.l.bf16 %v107
  %v379 = vunpack.c.h.bf16 %v107
  %v380 = vunpack.c.l.bf16 %v108
  %v381 = vunpack.c.h.bf16 %v108
  %v382 = vunpack.c.l.bf16 %v109
  %v383 = vunpack.c.h.bf16 %v109
  %v384 = vunpack.c.l.bf16 %v110
  %v385 = vunpack.c.h.bf16 %v110
  %v386 = vunpack.c.l.bf16 %v111
  %v387 = vunpack.c.h.bf16 %v111
  %v388 = vunpack.c.l.bf16 %v112
  %v389 = vunpack.c.h.bf16 %v112
  %v390 = vunpack.c.l.bf16 %v113
  %v391 = vunpack.c.h.bf16 %v113
  %v392 = vunpack.c.l.bf16 %v114
  %v393 = vunpack.c.h.bf16 %v114
  %v394 = vunpack.c.l.bf16 %v115
  %v395 = vunpack.c.h.bf16 %v115
  %v396 = vunpack.c.l.bf16 %v116
  %v397 = vunpack.c.h.bf16 %v116
  %v398 = vunpack.c.l.bf16 %v117
  %v399 = vunpack.c.h.bf16 %v117
  %v400 = vunpack.c.l.bf16 %v118
  %v401 = vunpack.c.h.bf16 %v118
  %v402 = vunpack.c.l.bf16 %v119
  %v403 = vunpack.c.h.bf16 %v119
  %v404 = vunpack.c.l.bf16 %v120
  %v405 = vunpack.c.h.bf16 %v120
  %v406 = vunpack.c.l.bf16 %v121
  %v407 = vunpack.c.h.bf16 %v121
  %v408 = vunpack.c.l.bf16 %v122
  %v409 = vunpack.c.h.bf16 %v122
  %v410 = vunpack.c.l.bf16 %v123
  %v411 = vunpack.c.h.bf16 %v123
  %v412 = vunpack.c.l.bf16 %v124
  %v413 = vunpack.c.h.bf16 %v124
  %v414 = vunpack.c.l.bf16 %v125
  %v415 = vunpack.c.h.bf16 %v125
  %v416 = vunpack.c.l.bf16 %v126
  %v417 = vunpack.c.h.bf16 %v126
  %v418 = vunpack.c.l.bf16 %v127
  %v419 = vunpack.c.h.bf16 %v127
  %v420 = vunpack.c.l.bf16 %v128
  %v421 = vunpack.c.h.bf16 %v128
  %v422 = vunpack.c.l.bf16 %v129
  %v423 = vunpack.c.h.bf16 %v129
  %v424 = vunpack.c.l.bf16 %v130
  %v425 = vunpack.c.h.bf16 %v130
  %v426 = vunpack.c.l.bf16 %v131
  %v427 = vunpack.c.h.bf16 %v131
  %v428 = vunpack.c.l.bf16 %v132
  %v429 = vunpack.c.h.bf16 %v132
  %v430 = vunpack.c.l.bf16 %v133
  %v431 = vunpack.c.h.bf16 %v133
  %v432 = vunpack.c.l.bf16 %v134
  %v433 = vunpack.c.h.bf16 %v134
  %v434 = vunpack.c.l.bf16 %v135
  %v435 = vunpack.c.h.bf16 %v135
  %v436 = vunpack.c.l.bf16 %v136
  %v437 = vunpack.c.h.bf16 %v136
  %v438 = vunpack.c.l.bf16 %v137
  %v439 = vunpack.c.h.bf16 %v137
  %v440 = vunpack.c.l.bf16 %v138
  %v441 = vunpack.c.h.bf16 %v138
  %v442 = vunpack.c.l.bf16 %v139
  %v443 = vunpack.c.h.bf16 %v139
  %v444 = vunpack.c.l.bf16 %v140
  %v445 = vunpack.c.h.bf16 %v140
  %v446 = vunpack.c.l.bf16 %v141
  %v447 = vunpack.c.h.bf16 %v141
  %v448 = vunpack.c.l.bf16 %v142
  %v449 = vunpack.c.h.bf16 %v142
  %v450 = vunpack.c.l.bf16 %v143
  %v451 = vunpack.c.h.bf16 %v143
  %v452 = vunpack.c.l.bf16 %v144
  %v453 = vunpack.c.h.bf16 %v144
  %v454 = vunpack.c.l.bf16 %v145
  %v455 = vunpack.c.h.bf16 %v145
  %v456 = vunpack.c.l.bf16 %v146
  %v457 = vunpack.c.h.bf16 %v146
  %v458 = vunpack.c.l.bf16 %v147
  %v459 = vunpack.c.h.bf16 %v147
  %v460 = vunpack.c.l.bf16 %v148
  %v461 = vunpack.c.h.bf16 %v148
  %v462 = vunpack.c.l.bf16 %v149
  %v463 = vunpack.c.h.bf16 %v149
  %v464 = vunpack.c.l.bf16 %v150
  %v465 = vunpack.c.h.bf16 %v150
  %v466 = vunpack.c.l.bf16 %v151
  %v467 = vunpack.c.h.bf16 %v151
  %v468 = vunpack.c.l.bf16 %v152
  %v469 = vunpack.c.h.bf16 %v152
  %v470 = vunpack.c.l.bf16 %v153
  %v471 = vunpack.c.h.bf16 %v153
  %v472 = vunpack.c.l.bf16 %v154
  %v473 = vunpack.c.h.bf16 %v154
  %v474 = vunpack.c.l.bf16 %v155
  %v475 = vunpack.c.h.bf16 %v155
  %v476 = vunpack.c.l.bf16 %v156
  %v477 = vunpack.c.h.bf16 %v156
  %v478 = vunpack.c.l.bf16 %v157
  %v479 = vunpack.c.h.bf16 %v157
  %v480 = vunpack.c.l.bf16 %v158
  %v481 = vunpack.c.h.bf16 %v158
  %v482 = vunpack.c.l.bf16 %v159
  %v483 = vunpack.c.h.bf16 %v159
  %v484 = vunpack.c.l.bf16 %v160
  %v485 = vunpack.c.h.bf16 %v160
  %v486 = vunpack.c.l.bf16 %v161
  %v487 = vunpack.c.h.bf16 %v161
  %v488 = vunpack.c.l.bf16 %v162
  %v489 = vunpack.c.h.bf16 %v162
  %v490 = vunpack.c.l.bf16 %v163
  %v491 = vunpack.c.h.bf16 %v163
  %v492 = vunpack.c.l.bf16 %v164
  %v493 = vunpack.c.h.bf16 %v164
  %v494 = vunpack.c.l.bf16 %v165
  %v495 = vunpack.c.h.bf16 %v165
  %v496 = vunpack.c.l.bf16 %v166
  %v497 = vunpack.c.h.bf16 %v166
  %v498 = vunpack.c.l.bf16 %v167
  %v499 = vunpack.c.h.bf16 %v167
  %v500 = vunpack.c.l.bf16 %v168
  %v501 = vunpack.c.h.bf16 %v168
  %v502 = vunpack.c.l.bf16 %v169
  %v503 = vunpack.c.h.bf16 %v169
  %v504 = vunpack.c.l.bf16 %v170
  %v505 = vunpack.c.h.bf16 %v170
  %v506 = vunpack.c.l.bf16 %v171
  %v507 = vunpack.c.h.bf16 %v171
  %v508 = vunpack.c.l.bf16 %v172
  %v509 = vunpack.c.h.bf16 %v172
  %v510 = vunpack.c.l.bf16 %v173
  %v511 = vunpack.c.h.bf16 %v173
  %v512 = vunpack.c.l.bf16 %v174
  %v513 = vunpack.c.h.bf16 %v174
  %v514 = vunpack.c.l.bf16 %v175
  %v515 = vunpack.c.h.bf16 %v175
  %v516 = vunpack.c.l.bf16 %v176
  %v517 = vunpack.c.h.bf16 %v176
  %v518 = vunpack.c.l.bf16 %v177
  %v519 = vunpack.c.h.bf16 %v177
  %v520 = vunpack.c.l.bf16 %v178
  %v521 = vunpack.c.h.bf16 %v178
  %v522 = vunpack.c.l.bf16 %v179
  %v523 = vunpack.c.h.bf16 %v179
  %v524 = vunpack.c.l.bf16 %v180
  %v525 = vunpack.c.h.bf16 %v180
  %v526 = vunpack.c.l.bf16 %v181
  %v527 = vunpack.c.h.bf16 %v181
  %v528 = vunpack.c.l.bf16 %v182
  %v529 = vunpack.c.h.bf16 %v182
  %v530 = vunpack.c.l.bf16 %v183
  %v531 = vunpack.c.h.bf16 %v183
  %v532 = vunpack.c.l.bf16 %v184
  %v533 = vunpack.c.h.bf16 %v184
  %v534 = vunpack.c.l.bf16 %v185
  %v535 = vunpack.c.h.bf16 %v185
  %v536 = vunpack.c.l.bf16 %v186
  %v537 = vunpack.c.h.bf16 %v186
  %v538 = vunpack.c.l.bf16 %v187
  %v539 = vunpack.c.h.bf16 %v187
  %v540 = vunpack.c.l.bf16 %v188
  %v541 = vunpack.c.h.bf16 %v188
  %v542 = vunpack.c.l.bf16 %v189
  %v543 = vunpack.c.h.bf16 %v189
  %v544 = vunpack.c.l.bf16 %v190
  %v545 = vunpack.c.h.bf16 %v190
  %v546 = vunpack.c.l.bf16 %v191
  %v547 = vunpack.c.h.bf16 %v191
  %v548 = vunpack.c.l.bf16 %v192
  %v549 = vunpack.c.h.bf16 %v192
  %v550 = vunpack.c.l.bf16 %v193
  %v551 = vunpack.c.h.bf16 %v193
  %v552 = vunpack.c.l.bf16 %v194
  %v553 = vunpack.c.h.bf16 %v194
  %v554 = vunpack.c.l.bf16 %v195
  %v555 = vunpack.c.h.bf16 %v195
  %v556 = vunpack.c.l.bf16 %v196
  %v557 = vunpack.c.h.bf16 %v196
  %v558 = vunpack.c.l.bf16 %v197
  %v559 = vunpack.c.h.bf16 %v197
  %v560 = vunpack.c.l.bf16 %v198
  %v561 = vunpack.c.h.bf16 %v198
  %v562 = vunpack.c.l.bf16 %v199
  %v563 = vunpack.c.h.bf16 %v199
  %v564 = vunpack.c.l.bf16 %v200
  %v565 = vunpack.c.h.bf16 %v200
  %v566 = vunpack.c.l.bf16 %v201
  %v567 = vunpack.c.h.bf16 %v201
  %v568 = vunpack.c.l.bf16 %v202
  %v569 = vunpack.c.h.bf16 %v202
  %v570 = vunpack.c.l.bf16 %v203
  %v571 = vunpack.c.h.bf16 %v203
  %v572 = vunpack.c.l.bf16 %v204
  %v573 = vunpack.c.h.bf16 %v204
  %v574 = vunpack.c.l.bf16 %v205
  %v575 = vunpack.c.h.bf16 %v205
  %v576 = vunpack.c.l.bf16 %v206
  %v577 = vunpack.c.h.bf16 %v206
  %v578 = vunpack.c.l.bf16 %v207
  %v579 = vunpack.c.h.bf16 %v207
  %v580 = vunpack.c.l.bf16 %v208
  %v581 = vunpack.c.h.bf16 %v208
  %v582 = vunpack.c.l.bf16 %v209
  %v583 = vunpack.c.h.bf16 %v209
  %v584 = vunpack.c.l.bf16 %v210
  %v585 = vunpack.c.h.bf16 %v210
  %v586 = vunpack.c.l.bf16 %v211
  %v587 = vunpack.c.h.bf16 %v211
  %v588 = vunpack.c.l.bf16 %v212
  %v589 = vunpack.c.h.bf16 %v212
  %v590 = vunpack.c.l.bf16 %v213
  %v591 = vunpack.c.h.bf16 %v213
  %v592 = vunpack.c.l.bf16 %v214
  %v593 = vunpack.c.h.bf16 %v214
  %v594 = vunpack.c.l.bf16 %v215
  %v595 = vunpack.c.h.bf16 %v215
  %v596 = vunpack.c.l.bf16 %v216
  %v597 = vunpack.c.h.bf16 %v216
  %v598 = vunpack.c.l.bf16 %v217
  %v599 = vunpack.c.h.bf16 %v217
  %v600 = vunpack.c.l.bf16 %v218
  %v601 = vunpack.c.h.bf16 %v218
  %v602 = vunpack.c.l.bf16 %v219
  %v603 = vunpack.c.h.bf16 %v219
  %v606 = vlaneseq
  %v607 = vshrl.u32 %v606, 7
  %v608 = vsub.s32 0, %v607
  %v609 = vrot.slane %v25, %v608
  %v610 = vlaneseq
  %v611 = vshrl.u32 %v610, 7
  %v612 = vsub.s32 1, %v611
  %v613 = vrot.slane %v25, %v612
  %v614 = vlaneseq
  %v615 = vshrl.u32 %v614, 7
  %v616 = vsub.s32 2, %v615
  %v617 = vrot.slane %v25, %v616
  %v618 = vlaneseq
  %v619 = vshrl.u32 %v618, 7
  %v620 = vsub.s32 3, %v619
  %v621 = vrot.slane %v25, %v620
  %v622 = vlaneseq
  %v623 = vshrl.u32 %v622, 7
  %v624 = vsub.s32 4, %v623
  %v625 = vrot.slane %v25, %v624
  %v626 = vlaneseq
  %v627 = vshrl.u32 %v626, 7
  %v628 = vsub.s32 5, %v627
  %v629 = vrot.slane %v25, %v628
  %v630 = vlaneseq
  %v631 = vshrl.u32 %v630, 7
  %v632 = vsub.s32 6, %v631
  %v633 = vrot.slane %v25, %v632
  %v634 = vlaneseq
  %v635 = vshrl.u32 %v634, 7
  %v636 = vsub.s32 7, %v635
  %v637 = vrot.slane %v25, %v636
  %v638 = vlaneseq
  %v639 = vshrl.u32 %v638, 7
  %v640 = vsub.s32 0, %v639
  %v641 = vrot.slane %v27, %v640
  %v642 = vlaneseq
  %v643 = vshrl.u32 %v642, 7
  %v644 = vsub.s32 1, %v643
  %v645 = vrot.slane %v27, %v644
  %v646 = vlaneseq
  %v647 = vshrl.u32 %v646, 7
  %v648 = vsub.s32 2, %v647
  %v649 = vrot.slane %v27, %v648
  %v650 = vlaneseq
  %v651 = vshrl.u32 %v650, 7
  %v652 = vsub.s32 3, %v651
  %v653 = vrot.slane %v27, %v652
  %v666 = vmul.f32 %v220, %v609
  %v667 = vmul.f32 %v221, %v613
  %v668 = vmul.f32 %v222, %v617
  %v669 = vmul.f32 %v223, %v621
  %v670 = vmul.f32 %v224, %v625
  %v671 = vmul.f32 %v225, %v629
  %v672 = vmul.f32 %v226, %v633
  %v673 = vmul.f32 %v227, %v637
  %v674 = vmul.f32 %v228, %v641
  %v675 = vmul.f32 %v229, %v645
  %v676 = vmul.f32 %v230, %v649
  %v677 = vmul.f32 %v231, %v653
  %v678 = vmul.f32 %v232, %v609
  %v679 = vmul.f32 %v233, %v613
  %v680 = vmul.f32 %v234, %v617
  %v681 = vmul.f32 %v235, %v621
  %v682 = vmul.f32 %v236, %v625
  %v683 = vmul.f32 %v237, %v629
  %v684 = vmul.f32 %v238, %v633
  %v685 = vmul.f32 %v239, %v637
  %v686 = vmul.f32 %v240, %v641
  %v687 = vmul.f32 %v241, %v645
  %v688 = vmul.f32 %v242, %v649
  %v689 = vmul.f32 %v243, %v653
  %v690 = vmul.f32 %v244, %v609
  %v691 = vmul.f32 %v245, %v613
  %v692 = vmul.f32 %v246, %v617
  %v693 = vmul.f32 %v247, %v621
  %v694 = vmul.f32 %v248, %v625
  %v695 = vmul.f32 %v249, %v629
  %v696 = vmul.f32 %v250, %v633
  %v697 = vmul.f32 %v251, %v637
  %v698 = vmul.f32 %v252, %v641
  %v699 = vmul.f32 %v253, %v645
  %v700 = vmul.f32 %v254, %v649
  %v701 = vmul.f32 %v255, %v653
  %v702 = vmul.f32 %v256, %v609
  %v703 = vmul.f32 %v257, %v613
  %v704 = vmul.f32 %v258, %v617
  %v705 = vmul.f32 %v259, %v621
  %v706 = vmul.f32 %v260, %v625
  %v707 = vmul.f32 %v261, %v629
  %v708 = vmul.f32 %v262, %v633
  %v709 = vmul.f32 %v263, %v637
  %v710 = vmul.f32 %v264, %v641
  %v711 = vmul.f32 %v265, %v645
  %v712 = vmul.f32 %v266, %v649
  %v713 = vmul.f32 %v267, %v653
  %v714 = vmul.f32 %v268, %v609
  %v715 = vmul.f32 %v269, %v613
  %v716 = vmul.f32 %v270, %v617
  %v717 = vmul.f32 %v271, %v621
  %v718 = vmul.f32 %v272, %v625
  %v719 = vmul.f32 %v273, %v629
  %v720 = vmul.f32 %v274, %v633
  %v721 = vmul.f32 %v275, %v637
  %v722 = vmul.f32 %v276, %v641
  %v723 = vmul.f32 %v277, %v645
  %v724 = vmul.f32 %v278, %v649
  %v725 = vmul.f32 %v279, %v653
  %v726 = vmul.f32 %v280, %v609
  %v727 = vmul.f32 %v281, %v613
  %v728 = vmul.f32 %v282, %v617
  %v729 = vmul.f32 %v283, %v621
  %v730 = vmul.f32 %v284, %v625
  %v731 = vmul.f32 %v285, %v629
  %v732 = vmul.f32 %v286, %v633
  %v733 = vmul.f32 %v287, %v637
  %v734 = vmul.f32 %v288, %v641
  %v735 = vmul.f32 %v289, %v645
  %v736 = vmul.f32 %v290, %v649
  %v737 = vmul.f32 %v291, %v653
  %v738 = vmul.f32 %v292, %v609
  %v739 = vmul.f32 %v293, %v613
  %v740 = vmul.f32 %v294, %v617
  %v741 = vmul.f32 %v295, %v621
  %v742 = vmul.f32 %v296, %v625
  %v743 = vmul.f32 %v297, %v629
  %v744 = vmul.f32 %v298, %v633
  %v745 = vmul.f32 %v299, %v637
  %v746 = vmul.f32 %v300, %v641
  %v747 = vmul.f32 %v301, %v645
  %v748 = vmul.f32 %v302, %v649
  %v749 = vmul.f32 %v303, %v653
  %v750 = vmul.f32 %v304, %v609
  %v751 = vmul.f32 %v305, %v613
  %v752 = vmul.f32 %v306, %v617
  %v753 = vmul.f32 %v307, %v621
  %v754 = vmul.f32 %v308, %v625
  %v755 = vmul.f32 %v309, %v629
  %v756 = vmul.f32 %v310, %v633
  %v757 = vmul.f32 %v311, %v637
  %v758 = vmul.f32 %v312, %v641
  %v759 = vmul.f32 %v313, %v645
  %v760 = vmul.f32 %v314, %v649
  %v761 = vmul.f32 %v315, %v653
  %v762 = vmul.f32 %v316, %v609
  %v763 = vmul.f32 %v317, %v613
  %v764 = vmul.f32 %v318, %v617
  %v765 = vmul.f32 %v319, %v621
  %v766 = vmul.f32 %v320, %v625
  %v767 = vmul.f32 %v321, %v629
  %v768 = vmul.f32 %v322, %v633
  %v769 = vmul.f32 %v323, %v637
  %v770 = vmul.f32 %v324, %v641
  %v771 = vmul.f32 %v325, %v645
  %v772 = vmul.f32 %v326, %v649
  %v773 = vmul.f32 %v327, %v653
  %v774 = vmul.f32 %v328, %v609
  %v775 = vmul.f32 %v329, %v613
  %v776 = vmul.f32 %v330, %v617
  %v777 = vmul.f32 %v331, %v621
  %v778 = vmul.f32 %v332, %v625
  %v779 = vmul.f32 %v333, %v629
  %v780 = vmul.f32 %v334, %v633
  %v781 = vmul.f32 %v335, %v637
  %v782 = vmul.f32 %v336, %v641
  %v783 = vmul.f32 %v337, %v645
  %v784 = vmul.f32 %v338, %v649
  %v785 = vmul.f32 %v339, %v653
  %v786 = vmul.f32 %v340, %v609
  %v787 = vmul.f32 %v341, %v613
  %v788 = vmul.f32 %v342, %v617
  %v789 = vmul.f32 %v343, %v621
  %v790 = vmul.f32 %v344, %v625
  %v791 = vmul.f32 %v345, %v629
  %v792 = vmul.f32 %v346, %v633
  %v793 = vmul.f32 %v347, %v637
  %v794 = vmul.f32 %v348, %v641
  %v795 = vmul.f32 %v349, %v645
  %v796 = vmul.f32 %v350, %v649
  %v797 = vmul.f32 %v351, %v653
  %v798 = vmul.f32 %v352, %v609
  %v799 = vmul.f32 %v353, %v613
  %v800 = vmul.f32 %v354, %v617
  %v801 = vmul.f32 %v355, %v621
  %v802 = vmul.f32 %v356, %v625
  %v803 = vmul.f32 %v357, %v629
  %v804 = vmul.f32 %v358, %v633
  %v805 = vmul.f32 %v359, %v637
  %v806 = vmul.f32 %v360, %v641
  %v807 = vmul.f32 %v361, %v645
  %v808 = vmul.f32 %v362, %v649
  %v809 = vmul.f32 %v363, %v653
  %v810 = vmul.f32 %v364, %v609
  %v811 = vmul.f32 %v365, %v613
  %v812 = vmul.f32 %v366, %v617
  %v813 = vmul.f32 %v367, %v621
  %v814 = vmul.f32 %v368, %v625
  %v815 = vmul.f32 %v369, %v629
  %v816 = vmul.f32 %v370, %v633
  %v817 = vmul.f32 %v371, %v637
  %v818 = vmul.f32 %v372, %v641
  %v819 = vmul.f32 %v373, %v645
  %v820 = vmul.f32 %v374, %v649
  %v821 = vmul.f32 %v375, %v653
  %v822 = vmul.f32 %v376, %v609
  %v823 = vmul.f32 %v377, %v613
  %v824 = vmul.f32 %v378, %v617
  %v825 = vmul.f32 %v379, %v621
  %v826 = vmul.f32 %v380, %v625
  %v827 = vmul.f32 %v381, %v629
  %v828 = vmul.f32 %v382, %v633
  %v829 = vmul.f32 %v383, %v637
  %v830 = vmul.f32 %v384, %v641
  %v831 = vmul.f32 %v385, %v645
  %v832 = vmul.f32 %v386, %v649
  %v833 = vmul.f32 %v387, %v653
  %v834 = vmul.f32 %v388, %v609
  %v835 = vmul.f32 %v389, %v613
  %v836 = vmul.f32 %v390, %v617
  %v837 = vmul.f32 %v391, %v621
  %v838 = vmul.f32 %v392, %v625
  %v839 = vmul.f32 %v393, %v629
  %v840 = vmul.f32 %v394, %v633
  %v841 = vmul.f32 %v395, %v637
  %v842 = vmul.f32 %v396, %v641
  %v843 = vmul.f32 %v397, %v645
  %v844 = vmul.f32 %v398, %v649
  %v845 = vmul.f32 %v399, %v653
  %v846 = vmul.f32 %v400, %v609
  %v847 = vmul.f32 %v401, %v613
  %v848 = vmul.f32 %v402, %v617
  %v849 = vmul.f32 %v403, %v621
  %v850 = vmul.f32 %v404, %v625
  %v851 = vmul.f32 %v405, %v629
  %v852 = vmul.f32 %v406, %v633
  %v853 = vmul.f32 %v407, %v637
  %v854 = vmul.f32 %v408, %v641
  %v855 = vmul.f32 %v409, %v645
  %v856 = vmul.f32 %v410, %v649
  %v857 = vmul.f32 %v411, %v653
  %v858 = vmul.f32 %v412, %v609
  %v859 = vmul.f32 %v413, %v613
  %v860 = vmul.f32 %v414, %v617
  %v861 = vmul.f32 %v415, %v621
  %v862 = vmul.f32 %v416, %v625
  %v863 = vmul.f32 %v417, %v629
  %v864 = vmul.f32 %v418, %v633
  %v865 = vmul.f32 %v419, %v637
  %v866 = vmul.f32 %v420, %v641
  %v867 = vmul.f32 %v421, %v645
  %v868 = vmul.f32 %v422, %v649
  %v869 = vmul.f32 %v423, %v653
  %v870 = vmul.f32 %v424, %v609
  %v871 = vmul.f32 %v425, %v613
  %v872 = vmul.f32 %v426, %v617
  %v873 = vmul.f32 %v427, %v621
  %v874 = vmul.f32 %v428, %v625
  %v875 = vmul.f32 %v429, %v629
  %v876 = vmul.f32 %v430, %v633
  %v877 = vmul.f32 %v431, %v637
  %v878 = vmul.f32 %v432, %v641
  %v879 = vmul.f32 %v433, %v645
  %v880 = vmul.f32 %v434, %v649
  %v881 = vmul.f32 %v435, %v653
  %v882 = vmul.f32 %v436, %v609
  %v883 = vmul.f32 %v437, %v613
  %v884 = vmul.f32 %v438, %v617
  %v885 = vmul.f32 %v439, %v621
  %v886 = vmul.f32 %v440, %v625
  %v887 = vmul.f32 %v441, %v629
  %v888 = vmul.f32 %v442, %v633
  %v889 = vmul.f32 %v443, %v637
  %v890 = vmul.f32 %v444, %v641
  %v891 = vmul.f32 %v445, %v645
  %v892 = vmul.f32 %v446, %v649
  %v893 = vmul.f32 %v447, %v653
  %v894 = vmul.f32 %v448, %v609
  %v895 = vmul.f32 %v449, %v613
  %v896 = vmul.f32 %v450, %v617
  %v897 = vmul.f32 %v451, %v621
  %v898 = vmul.f32 %v452, %v625
  %v899 = vmul.f32 %v453, %v629
  %v900 = vmul.f32 %v454, %v633
  %v901 = vmul.f32 %v455, %v637
  %v902 = vmul.f32 %v456, %v641
  %v903 = vmul.f32 %v457, %v645
  %v904 = vmul.f32 %v458, %v649
  %v905 = vmul.f32 %v459, %v653
  %v906 = vmul.f32 %v460, %v609
  %v907 = vmul.f32 %v461, %v613
  %v908 = vmul.f32 %v462, %v617
  %v909 = vmul.f32 %v463, %v621
  %v910 = vmul.f32 %v464, %v625
  %v911 = vmul.f32 %v465, %v629
  %v912 = vmul.f32 %v466, %v633
  %v913 = vmul.f32 %v467, %v637
  %v914 = vmul.f32 %v468, %v641
  %v915 = vmul.f32 %v469, %v645
  %v916 = vmul.f32 %v470, %v649
  %v917 = vmul.f32 %v471, %v653
  %v918 = vmul.f32 %v472, %v609
  %v919 = vmul.f32 %v473, %v613
  %v920 = vmul.f32 %v474, %v617
  %v921 = vmul.f32 %v475, %v621
  %v922 = vmul.f32 %v476, %v625
  %v923 = vmul.f32 %v477, %v629
  %v924 = vmul.f32 %v478, %v633
  %v925 = vmul.f32 %v479, %v637
  %v926 = vmul.f32 %v480, %v641
  %v927 = vmul.f32 %v481, %v645
  %v928 = vmul.f32 %v482, %v649
  %v929 = vmul.f32 %v483, %v653
  %v930 = vmul.f32 %v484, %v609
  %v931 = vmul.f32 %v485, %v613
  %v932 = vmul.f32 %v486, %v617
  %v933 = vmul.f32 %v487, %v621
  %v934 = vmul.f32 %v488, %v625
  %v935 = vmul.f32 %v489, %v629
  %v936 = vmul.f32 %v490, %v633
  %v937 = vmul.f32 %v491, %v637
  %v938 = vmul.f32 %v492, %v641
  %v939 = vmul.f32 %v493, %v645
  %v940 = vmul.f32 %v494, %v649
  %v941 = vmul.f32 %v495, %v653
  %v942 = vmul.f32 %v496, %v609
  %v943 = vmul.f32 %v497, %v613
  %v944 = vmul.f32 %v498, %v617
  %v945 = vmul.f32 %v499, %v621
  %v946 = vmul.f32 %v500, %v625
  %v947 = vmul.f32 %v501, %v629
  %v948 = vmul.f32 %v502, %v633
  %v949 = vmul.f32 %v503, %v637
  %v950 = vmul.f32 %v504, %v641
  %v951 = vmul.f32 %v505, %v645
  %v952 = vmul.f32 %v506, %v649
  %v953 = vmul.f32 %v507, %v653
  %v954 = vmul.f32 %v508, %v609
  %v955 = vmul.f32 %v509, %v613
  %v956 = vmul.f32 %v510, %v617
  %v957 = vmul.f32 %v511, %v621
  %v958 = vmul.f32 %v512, %v625
  %v959 = vmul.f32 %v513, %v629
  %v960 = vmul.f32 %v514, %v633
  %v961 = vmul.f32 %v515, %v637
  %v962 = vmul.f32 %v516, %v641
  %v963 = vmul.f32 %v517, %v645
  %v964 = vmul.f32 %v518, %v649
  %v965 = vmul.f32 %v519, %v653
  %v966 = vmul.f32 %v520, %v609
  %v967 = vmul.f32 %v521, %v613
  %v968 = vmul.f32 %v522, %v617
  %v969 = vmul.f32 %v523, %v621
  %v970 = vmul.f32 %v524, %v625
  %v971 = vmul.f32 %v525, %v629
  %v972 = vmul.f32 %v526, %v633
  %v973 = vmul.f32 %v527, %v637
  %v974 = vmul.f32 %v528, %v641
  %v975 = vmul.f32 %v529, %v645
  %v976 = vmul.f32 %v530, %v649
  %v977 = vmul.f32 %v531, %v653
  %v978 = vmul.f32 %v532, %v609
  %v979 = vmul.f32 %v533, %v613
  %v980 = vmul.f32 %v534, %v617
  %v981 = vmul.f32 %v535, %v621
  %v982 = vmul.f32 %v536, %v625
  %v983 = vmul.f32 %v537, %v629
  %v984 = vmul.f32 %v538, %v633
  %v985 = vmul.f32 %v539, %v637
  %v986 = vmul.f32 %v540, %v641
  %v987 = vmul.f32 %v541, %v645
  %v988 = vmul.f32 %v542, %v649
  %v989 = vmul.f32 %v543, %v653
  %v990 = vmul.f32 %v544, %v609
  %v991 = vmul.f32 %v545, %v613
  %v992 = vmul.f32 %v546, %v617
  %v993 = vmul.f32 %v547, %v621
  %v994 = vmul.f32 %v548, %v625
  %v995 = vmul.f32 %v549, %v629
  %v996 = vmul.f32 %v550, %v633
  %v997 = vmul.f32 %v551, %v637
  %v998 = vmul.f32 %v552, %v641
  %v999 = vmul.f32 %v553, %v645
  %v1000 = vmul.f32 %v554, %v649
  %v1001 = vmul.f32 %v555, %v653
  %v1002 = vmul.f32 %v556, %v609
  %v1003 = vmul.f32 %v557, %v613
  %v1004 = vmul.f32 %v558, %v617
  %v1005 = vmul.f32 %v559, %v621
  %v1006 = vmul.f32 %v560, %v625
  %v1007 = vmul.f32 %v561, %v629
  %v1008 = vmul.f32 %v562, %v633
  %v1009 = vmul.f32 %v563, %v637
  %v1010 = vmul.f32 %v564, %v641
  %v1011 = vmul.f32 %v565, %v645
  %v1012 = vmul.f32 %v566, %v649
  %v1013 = vmul.f32 %v567, %v653
  %v1014 = vmul.f32 %v568, %v609
  %v1015 = vmul.f32 %v569, %v613
  %v1016 = vmul.f32 %v570, %v617
  %v1017 = vmul.f32 %v571, %v621
  %v1018 = vmul.f32 %v572, %v625
  %v1019 = vmul.f32 %v573, %v629
  %v1020 = vmul.f32 %v574, %v633
  %v1021 = vmul.f32 %v575, %v637
  %v1022 = vmul.f32 %v576, %v641
  %v1023 = vmul.f32 %v577, %v645
  %v1024 = vmul.f32 %v578, %v649
  %v1025 = vmul.f32 %v579, %v653
  %v1026 = vmul.f32 %v580, %v609
  %v1027 = vmul.f32 %v581, %v613
  %v1028 = vmul.f32 %v582, %v617
  %v1029 = vmul.f32 %v583, %v621
  %v1030 = vmul.f32 %v584, %v625
  %v1031 = vmul.f32 %v585, %v629
  %v1032 = vmul.f32 %v586, %v633
  %v1033 = vmul.f32 %v587, %v637
  %v1034 = vmul.f32 %v588, %v641
  %v1035 = vmul.f32 %v589, %v645
  %v1036 = vmul.f32 %v590, %v649
  %v1037 = vmul.f32 %v591, %v653
  %v1038 = vmul.f32 %v592, %v609
  %v1039 = vmul.f32 %v593, %v613
  %v1040 = vmul.f32 %v594, %v617
  %v1041 = vmul.f32 %v595, %v621
  %v1042 = vmul.f32 %v596, %v625
  %v1043 = vmul.f32 %v597, %v629
  %v1044 = vmul.f32 %v598, %v633
  %v1045 = vmul.f32 %v599, %v637
  %v1046 = vmul.f32 %v600, %v641
  %v1047 = vmul.f32 %v601, %v645
  %v1048 = vmul.f32 %v602, %v649
  %v1049 = vmul.f32 %v603, %v653
  %v1050 = vld [vmem:[%s2] sm:$0xff]
  %v1051 = vld [vmem:[%s2 + $0x8] sm:$0xff]
  %v1052 = vld [vmem:[%s2 + $0x10] sm:$0xff]
  %v1053 = vld [vmem:[%s2 + $0x18] sm:$0xff]
  %v1054 = vld [vmem:[%s2 + $0x20] sm:$0xff]
  %v1055 = vld [vmem:[%s2 + $0x28] sm:$0xff]
  %v1056 = vld [vmem:[%s2 + $0x30] sm:$0xff]
  %v1057 = vld [vmem:[%s2 + $0x38] sm:$0xff]
  %v1058 = vld [vmem:[%s2 + $0x40] sm:$0xff]
  %v1059 = vld [vmem:[%s2 + $0x48] sm:$0xff]
  %v1060 = vld [vmem:[%s2 + $0x50] sm:$0xff]
  %v1061 = vld [vmem:[%s2 + $0x58] sm:$0xff]
  %v1062 = vld [vmem:[%s2 + $0x60] sm:$0xff]
  %v1063 = vld [vmem:[%s2 + $0x68] sm:$0xff]
  %v1064 = vld [vmem:[%s2 + $0x70] sm:$0xff]
  %v1065 = vld [vmem:[%s2 + $0x78] sm:$0xff]
  %v1066 = vld [vmem:[%s2 + $0x80] sm:$0xff]
  %v1067 = vld [vmem:[%s2 + $0x88] sm:$0xff]
  %v1068 = vld [vmem:[%s2 + $0x90] sm:$0xff]
  %v1069 = vld [vmem:[%s2 + $0x98] sm:$0xff]
  %v1070 = vld [vmem:[%s2 + $0xa0] sm:$0xff]
  %v1071 = vld [vmem:[%s2 + $0xa8] sm:$0xff]
  %v1072 = vld [vmem:[%s2 + $0xb0] sm:$0xff]
  %v1073 = vld [vmem:[%s2 + $0xb8] sm:$0xff]
  %v1074 = vld [vmem:[%s2 + $0xc0] sm:$0xff]
  %v1075 = vld [vmem:[%s2 + $0xc8] sm:$0xff]
  %v1076 = vld [vmem:[%s2 + $0xd0] sm:$0xff]
  %v1077 = vld [vmem:[%s2 + $0xd8] sm:$0xff]
  %v1078 = vld [vmem:[%s2 + $0xe0] sm:$0xff]
  %v1079 = vld [vmem:[%s2 + $0xe8] sm:$0xff]
  %v1080 = vld [vmem:[%s2 + $0xf0] sm:$0xff]
  %v1081 = vld [vmem:[%s2 + $0xf8] sm:$0xff]
  %v1082 = vld [vmem:[%s2 + $0x100] sm:$0xff]
  %v1083 = vld [vmem:[%s2 + $0x108] sm:$0xff]
  %v1084 = vld [vmem:[%s2 + $0x110] sm:$0xff]
  %v1085 = vld [vmem:[%s2 + $0x118] sm:$0xff]
  %v1086 = vld [vmem:[%s2 + $0x120] sm:$0xff]
  %v1087 = vld [vmem:[%s2 + $0x128] sm:$0xff]
  %v1088 = vld [vmem:[%s2 + $0x130] sm:$0xff]
  %v1089 = vld [vmem:[%s2 + $0x138] sm:$0xff]
  %v1090 = vld [vmem:[%s2 + $0x140] sm:$0xff]
  %v1091 = vld [vmem:[%s2 + $0x148] sm:$0xff]
  %v1092 = vld [vmem:[%s2 + $0x150] sm:$0xff]
  %v1093 = vld [vmem:[%s2 + $0x158] sm:$0xff]
  %v1094 = vld [vmem:[%s2 + $0x160] sm:$0xff]
  %v1095 = vld [vmem:[%s2 + $0x168] sm:$0xff]
  %v1096 = vld [vmem:[%s2 + $0x170] sm:$0xff]
  %v1097 = vld [vmem:[%s2 + $0x178] sm:$0xff]
  %v1098 = vld [vmem:[%s2 + $0x180] sm:$0xff]
  %v1099 = vld [vmem:[%s2 + $0x188] sm:$0xff]
  %v1100 = vld [vmem:[%s2 + $0x190] sm:$0xff]
  %v1101 = vld [vmem:[%s2 + $0x198] sm:$0xff]
  %v1102 = vld [vmem:[%s2 + $0x1a0] sm:$0xff]
  %v1103 = vld [vmem:[%s2 + $0x1a8] sm:$0xff]
  %v1104 = vld [vmem:[%s2 + $0x1b0] sm:$0xff]
  %v1105 = vld [vmem:[%s2 + $0x1b8] sm:$0xff]
  %v1106 = vld [vmem:[%s2 + $0x1c0] sm:$0xff]
  %v1107 = vld [vmem:[%s2 + $0x1c8] sm:$0xff]
  %v1108 = vld [vmem:[%s2 + $0x1d0] sm:$0xff]
  %v1109 = vld [vmem:[%s2 + $0x1d8] sm:$0xff]
  %v1110 = vld [vmem:[%s2 + $0x1e0] sm:$0xff]
  %v1111 = vld [vmem:[%s2 + $0x1e8] sm:$0xff]
  %v1112 = vld [vmem:[%s2 + $0x1f0] sm:$0xff]
  %v1113 = vld [vmem:[%s2 + $0x1f8] sm:$0xff]
  %v1114 = vld [vmem:[%s2 + $0x200] sm:$0xff]
  %v1115 = vld [vmem:[%s2 + $0x208] sm:$0xff]
  %v1116 = vld [vmem:[%s2 + $0x210] sm:$0xff]
  %v1117 = vld [vmem:[%s2 + $0x218] sm:$0xff]
  %v1118 = vld [vmem:[%s2 + $0x220] sm:$0xff]
  %v1119 = vld [vmem:[%s2 + $0x228] sm:$0xff]
  %v1120 = vld [vmem:[%s2 + $0x230] sm:$0xff]
  %v1121 = vld [vmem:[%s2 + $0x238] sm:$0xff]
  %v1122 = vld [vmem:[%s2 + $0x240] sm:$0xff]
  %v1123 = vld [vmem:[%s2 + $0x248] sm:$0xff]
  %v1124 = vld [vmem:[%s2 + $0x250] sm:$0xff]
  %v1125 = vld [vmem:[%s2 + $0x258] sm:$0xff]
  %v1126 = vld [vmem:[%s2 + $0x260] sm:$0xff]
  %v1127 = vld [vmem:[%s2 + $0x268] sm:$0xff]
  %v1128 = vld [vmem:[%s2 + $0x270] sm:$0xff]
  %v1129 = vld [vmem:[%s2 + $0x278] sm:$0xff]
  %v1130 = vld [vmem:[%s2 + $0x280] sm:$0xff]
  %v1131 = vld [vmem:[%s2 + $0x288] sm:$0xff]
  %v1132 = vld [vmem:[%s2 + $0x290] sm:$0xff]
  %v1133 = vld [vmem:[%s2 + $0x298] sm:$0xff]
  %v1134 = vld [vmem:[%s2 + $0x2a0] sm:$0xff]
  %v1135 = vld [vmem:[%s2 + $0x2a8] sm:$0xff]
  %v1136 = vld [vmem:[%s2 + $0x2b0] sm:$0xff]
  %v1137 = vld [vmem:[%s2 + $0x2b8] sm:$0xff]
  %v1138 = vld [vmem:[%s2 + $0x2c0] sm:$0xff]
  %v1139 = vld [vmem:[%s2 + $0x2c8] sm:$0xff]
  %v1140 = vld [vmem:[%s2 + $0x2d0] sm:$0xff]
  %v1141 = vld [vmem:[%s2 + $0x2d8] sm:$0xff]
  %v1142 = vld [vmem:[%s2 + $0x2e0] sm:$0xff]
  %v1143 = vld [vmem:[%s2 + $0x2e8] sm:$0xff]
  %v1144 = vld [vmem:[%s2 + $0x2f0] sm:$0xff]
  %v1145 = vld [vmem:[%s2 + $0x2f8] sm:$0xff]
  %v1146 = vld [vmem:[%s2 + $0x300] sm:$0xff]
  %v1147 = vld [vmem:[%s2 + $0x308] sm:$0xff]
  %v1148 = vld [vmem:[%s2 + $0x310] sm:$0xff]
  %v1149 = vld [vmem:[%s2 + $0x318] sm:$0xff]
  %v1150 = vld [vmem:[%s2 + $0x320] sm:$0xff]
  %v1151 = vld [vmem:[%s2 + $0x328] sm:$0xff]
  %v1152 = vld [vmem:[%s2 + $0x330] sm:$0xff]
  %v1153 = vld [vmem:[%s2 + $0x338] sm:$0xff]
  %v1154 = vld [vmem:[%s2 + $0x340] sm:$0xff]
  %v1155 = vld [vmem:[%s2 + $0x348] sm:$0xff]
  %v1156 = vld [vmem:[%s2 + $0x350] sm:$0xff]
  %v1157 = vld [vmem:[%s2 + $0x358] sm:$0xff]
  %v1158 = vld [vmem:[%s2 + $0x360] sm:$0xff]
  %v1159 = vld [vmem:[%s2 + $0x368] sm:$0xff]
  %v1160 = vld [vmem:[%s2 + $0x370] sm:$0xff]
  %v1161 = vld [vmem:[%s2 + $0x378] sm:$0xff]
  %v1162 = vld [vmem:[%s2 + $0x380] sm:$0xff]
  %v1163 = vld [vmem:[%s2 + $0x388] sm:$0xff]
  %v1164 = vld [vmem:[%s2 + $0x390] sm:$0xff]
  %v1165 = vld [vmem:[%s2 + $0x398] sm:$0xff]
  %v1166 = vld [vmem:[%s2 + $0x3a0] sm:$0xff]
  %v1167 = vld [vmem:[%s2 + $0x3a8] sm:$0xff]
  %v1168 = vld [vmem:[%s2 + $0x3b0] sm:$0xff]
  %v1169 = vld [vmem:[%s2 + $0x3b8] sm:$0xff]
  %v1170 = vld [vmem:[%s2 + $0x3c0] sm:$0xff]
  %v1171 = vld [vmem:[%s2 + $0x3c8] sm:$0xff]
  %v1172 = vld [vmem:[%s2 + $0x3d0] sm:$0xff]
  %v1173 = vld [vmem:[%s2 + $0x3d8] sm:$0xff]
  %v1174 = vld [vmem:[%s2 + $0x3e0] sm:$0xff]
  %v1175 = vld [vmem:[%s2 + $0x3e8] sm:$0xff]
  %v1176 = vld [vmem:[%s2 + $0x3f0] sm:$0xff]
  %v1177 = vld [vmem:[%s2 + $0x3f8] sm:$0xff]
  %v1178 = vld [vmem:[%s2 + $0x400] sm:$0xff]
  %v1179 = vld [vmem:[%s2 + $0x408] sm:$0xff]
  %v1180 = vld [vmem:[%s2 + $0x410] sm:$0xff]
  %v1181 = vld [vmem:[%s2 + $0x418] sm:$0xff]
  %v1182 = vld [vmem:[%s2 + $0x420] sm:$0xff]
  %v1183 = vld [vmem:[%s2 + $0x428] sm:$0xff]
  %v1184 = vld [vmem:[%s2 + $0x430] sm:$0xff]
  %v1185 = vld [vmem:[%s2 + $0x438] sm:$0xff]
  %v1186 = vld [vmem:[%s2 + $0x440] sm:$0xff]
  %v1187 = vld [vmem:[%s2 + $0x448] sm:$0xff]
  %v1188 = vld [vmem:[%s2 + $0x450] sm:$0xff]
  %v1189 = vld [vmem:[%s2 + $0x458] sm:$0xff]
  %v1190 = vld [vmem:[%s2 + $0x460] sm:$0xff]
  %v1191 = vld [vmem:[%s2 + $0x468] sm:$0xff]
  %v1192 = vld [vmem:[%s2 + $0x470] sm:$0xff]
  %v1193 = vld [vmem:[%s2 + $0x478] sm:$0xff]
  %v1194 = vld [vmem:[%s2 + $0x480] sm:$0xff]
  %v1195 = vld [vmem:[%s2 + $0x488] sm:$0xff]
  %v1196 = vld [vmem:[%s2 + $0x490] sm:$0xff]
  %v1197 = vld [vmem:[%s2 + $0x498] sm:$0xff]
  %v1198 = vld [vmem:[%s2 + $0x4a0] sm:$0xff]
  %v1199 = vld [vmem:[%s2 + $0x4a8] sm:$0xff]
  %v1200 = vld [vmem:[%s2 + $0x4b0] sm:$0xff]
  %v1201 = vld [vmem:[%s2 + $0x4b8] sm:$0xff]
  %v1202 = vld [vmem:[%s2 + $0x4c0] sm:$0xff]
  %v1203 = vld [vmem:[%s2 + $0x4c8] sm:$0xff]
  %v1204 = vld [vmem:[%s2 + $0x4d0] sm:$0xff]
  %v1205 = vld [vmem:[%s2 + $0x4d8] sm:$0xff]
  %v1206 = vld [vmem:[%s2 + $0x4e0] sm:$0xff]
  %v1207 = vld [vmem:[%s2 + $0x4e8] sm:$0xff]
  %v1208 = vld [vmem:[%s2 + $0x4f0] sm:$0xff]
  %v1209 = vld [vmem:[%s2 + $0x4f8] sm:$0xff]
  %v1210 = vld [vmem:[%s2 + $0x500] sm:$0xff]
  %v1211 = vld [vmem:[%s2 + $0x508] sm:$0xff]
  %v1212 = vld [vmem:[%s2 + $0x510] sm:$0xff]
  %v1213 = vld [vmem:[%s2 + $0x518] sm:$0xff]
  %v1214 = vld [vmem:[%s2 + $0x520] sm:$0xff]
  %v1215 = vld [vmem:[%s2 + $0x528] sm:$0xff]
  %v1216 = vld [vmem:[%s2 + $0x530] sm:$0xff]
  %v1217 = vld [vmem:[%s2 + $0x538] sm:$0xff]
  %v1218 = vld [vmem:[%s2 + $0x540] sm:$0xff]
  %v1219 = vld [vmem:[%s2 + $0x548] sm:$0xff]
  %v1220 = vld [vmem:[%s2 + $0x550] sm:$0xff]
  %v1221 = vld [vmem:[%s2 + $0x558] sm:$0xff]
  %v1222 = vld [vmem:[%s2 + $0x560] sm:$0xff]
  %v1223 = vld [vmem:[%s2 + $0x568] sm:$0xff]
  %v1224 = vld [vmem:[%s2 + $0x570] sm:$0xff]
  %v1225 = vld [vmem:[%s2 + $0x578] sm:$0xff]
  %v1226 = vld [vmem:[%s2 + $0x580] sm:$0xff]
  %v1227 = vld [vmem:[%s2 + $0x588] sm:$0xff]
  %v1228 = vld [vmem:[%s2 + $0x590] sm:$0xff]
  %v1229 = vld [vmem:[%s2 + $0x598] sm:$0xff]
  %v1230 = vld [vmem:[%s2 + $0x5a0] sm:$0xff]
  %v1231 = vld [vmem:[%s2 + $0x5a8] sm:$0xff]
  %v1232 = vld [vmem:[%s2 + $0x5b0] sm:$0xff]
  %v1233 = vld [vmem:[%s2 + $0x5b8] sm:$0xff]
  %v1234 = vld [vmem:[%s2 + $0x5c0] sm:$0xff]
  %v1235 = vld [vmem:[%s2 + $0x5c8] sm:$0xff]
  %v1236 = vld [vmem:[%s2 + $0x5d0] sm:$0xff]
  %v1237 = vld [vmem:[%s2 + $0x5d8] sm:$0xff]
  %v1238 = vld [vmem:[%s2 + $0x5e0] sm:$0xff]
  %v1239 = vld [vmem:[%s2 + $0x5e8] sm:$0xff]
  %v1240 = vld [vmem:[%s2 + $0x5f0] sm:$0xff]
  %v1241 = vld [vmem:[%s2 + $0x5f8] sm:$0xff]
  %1242 = vmatprep.subr.mxu0 0.0
  %1243 = vmatpush1.msra.mxu0 %v1050
  %1244 = vmatprep.subr.mxu0 0.0
  %1245 = vmatpush1.msra.mxu0 %v1051
  %1246 = vmatprep.subr.mxu0 0.0
  %1247 = vmatpush1.msra.mxu0 %v1052
  %1248 = vmatprep.subr.mxu0 0.0
  %1249 = vmatpush1.msra.mxu0 %v1053
  %1250 = vmatprep.subr.mxu0 0.0
  %1251 = vmatpush1.msra.mxu0 %v1054
  %1252 = vmatprep.subr.mxu0 0.0
  %1253 = vmatpush1.msra.mxu0 %v1055
  %1254 = vmatprep.subr.mxu0 0.0
  %1255 = vmatpush1.msra.mxu0 %v1056
  %1256 = vmatprep.subr.mxu0 0.0
  %1257 = vmatpush1.msra.mxu0 %v1057
  %1258 = vmatprep.subr.mxu0 0.0
  %1259 = vmatpush1.msra.mxu0 %v1058
  %1260 = vmatprep.subr.mxu0 0.0
  %1261 = vmatpush1.msra.mxu0 %v1059
  %1262 = vmatprep.subr.mxu0 0.0
  %1263 = vmatpush1.msra.mxu0 %v1060
  %1264 = vmatprep.subr.mxu0 0.0
  %1265 = vmatpush1.msra.mxu0 %v1061
  %1266 = vmatprep.subr.mxu0 0.0
  %1267 = vmatpush1.msra.mxu0 %v1062
  %1268 = vmatprep.subr.mxu0 0.0
  %1269 = vmatpush1.msra.mxu0 %v1063
  %1270 = vmatprep.subr.mxu0 0.0
  %1271 = vmatpush1.msra.mxu0 %v1064
  %1272 = vmatprep.subr.mxu0 0.0
  %1273 = vmatpush1.msra.mxu0 %v1065
  %1274 = vmatprep.subr.mxu0 0.0
  %1275 = vmatpush1.msra.mxu0 %v1066
  %1276 = vmatprep.subr.mxu0 0.0
  %1277 = vmatpush1.msra.mxu0 %v1067
  %1278 = vmatprep.subr.mxu0 0.0
  %1279 = vmatpush1.msra.mxu0 %v1068
  %1280 = vmatprep.subr.mxu0 0.0
  %1281 = vmatpush1.msra.mxu0 %v1069
  %1282 = vmatprep.subr.mxu0 0.0
  %1283 = vmatpush1.msra.mxu0 %v1070
  %1284 = vmatprep.subr.mxu0 0.0
  %1285 = vmatpush1.msra.mxu0 %v1071
  %1286 = vmatprep.subr.mxu0 0.0
  %1287 = vmatpush1.msra.mxu0 %v1072
  %1288 = vmatprep.subr.mxu0 0.0
  %1289 = vmatpush1.msra.mxu0 %v1073
  %1290 = vmatprep.subr.mxu0 0.0
  %1291 = vmatpush1.msra.mxu0 %v1074
  %1292 = vmatprep.subr.mxu0 0.0
  %1293 = vmatpush1.msra.mxu0 %v1075
  %1294 = vmatprep.subr.mxu0 0.0
  %1295 = vmatpush1.msra.mxu0 %v1076
  %1296 = vmatprep.subr.mxu0 0.0
  %1297 = vmatpush1.msra.mxu0 %v1077
  %1298 = vmatprep.subr.mxu0 0.0
  %1299 = vmatpush1.msra.mxu0 %v1078
  %1300 = vmatprep.subr.mxu0 0.0
  %1301 = vmatpush1.msra.mxu0 %v1079
  %1302 = vmatprep.subr.mxu0 0.0
  %1303 = vmatpush1.msra.mxu0 %v1080
  %1304 = vmatprep.subr.mxu0 0.0
  %1305 = vmatpush1.msra.mxu0 %v1081
  %1306 = vmatprep.mubr.f32.mxu0 %v667
  %1307 = vmatmul.mubr.f32.gmra.mrb[0].mxu0 %v666
  %v1308 = vpop.f32.mrb[0].mxu0
  %v1309 = vadd.f32 0.0, %v1308
  %v1310 = vpop.f32.mrb[0].mxu0
  %1311 = vmatprep.mubr.f32.mxu0 %v679
  %1312 = vmatmul.mubr.f32.gmra.mrb[0].mxu0 %v678
  %v1313 = vpop.f32.mrb[0].mxu0
  %v1314 = vadd.f32 0.0, %v1313
  %v1315 = vpop.f32.mrb[0].mxu0
  %1316 = vmatprep.mubr.f32.mxu0 %v691
  %1317 = vmatmul.mubr.f32.gmra.mrb[0].mxu0 %v690
  %v1318 = vpop.f32.mrb[0].mxu0
  %v1319 = vadd.f32 0.0, %v1318
  %v1320 = vpop.f32.mrb[0].mxu0
  %1321 = vmatprep.mubr.f32.mxu0 %v703
  %1322 = vmatmul.mubr.f32.gmra.mrb[0].mxu0 %v702
  %v1323 = vpop.f32.mrb[0].mxu0
  %v1324 = vadd.f32 0.0, %v1323
  %v1325 = vpop.f32.mrb[0].mxu0
  %1326 = vmatprep.mubr.f32.mxu0 %v715
  %1327 = vmatmul.mubr.f32.gmra.mrb[0].mxu0 %v714
  %v1328 = vpop.f32.mrb[0].mxu0
  %v1329 = vadd.f32 0.0, %v1328
  %v1330 = vpop.f32.mrb[0].mxu0
  %1331 = vmatprep.mubr.f32.mxu0 %v727
  %1332 = vmatmul.mubr.f32.gmra.mrb[0].mxu0 %v726
  %v1333 = vpop.f32.mrb[0].mxu0
  %v1334 = vadd.f32 0.0, %v1333
  %v1335 = vpop.f32.mrb[0].mxu0
  %1336 = vmatprep.mubr.f32.mxu0 %v739
  %1337 = vmatmul.mubr.f32.gmra.mrb[0].mxu0 %v738
  %v1338 = vpop.f32.mrb[0].mxu0
  %v1339 = vadd.f32 0.0, %v1338
  %v1340 = vpop.f32.mrb[0].mxu0
  %1341 = vmatprep.mubr.f32.mxu0 %v751
  %1342 = vmatmul.mubr.f32.gmra.mrb[0].mxu0 %v750
  %v1343 = vpop.f32.mrb[0].mxu0
  %v1344 = vadd.f32 0.0, %v1343
  %v1345 = vpop.f32.mrb[0].mxu0
  %1346 = vmatprep.mubr.f32.mxu0 %v763
  %1347 = vmatmul.mubr.f32.gmra.mrb[0].mxu0 %v762
  %v1348 = vpop.f32.mrb[0].mxu0
  %v1349 = vadd.f32 0.0, %v1348
  %v1350 = vpop.f32.mrb[0].mxu0
  %1351 = vmatprep.mubr.f32.mxu0 %v775
  %1352 = vmatmul.mubr.f32.gmra.mrb[0].mxu0 %v774
  %v1353 = vpop.f32.mrb[0].mxu0
  %v1354 = vadd.f32 0.0, %v1353
  %v1355 = vpop.f32.mrb[0].mxu0
  %1356 = vmatprep.mubr.f32.mxu0 %v787
  %1357 = vmatmul.mubr.f32.gmra.mrb[0].mxu0 %v786
  %v1358 = vpop.f32.mrb[0].mxu0
  %v1359 = vadd.f32 0.0, %v1358
  %v1360 = vpop.f32.mrb[0].mxu0
  %1361 = vmatprep.mubr.f32.mxu0 %v799
  %1362 = vmatmul.mubr.f32.gmra.mrb[0].mxu0 %v798
  %v1363 = vpop.f32.mrb[0].mxu0
  %v1364 = vadd.f32 0.0, %v1363
  %v1365 = vpop.f32.mrb[0].mxu0
  %1366 = vmatprep.mubr.f32.mxu0 %v811
  %1367 = vmatmul.mubr.f32.gmra.mrb[0].mxu0 %v810
  %v1368 = vpop.f32.mrb[0].mxu0
  %v1369 = vadd.f32 0.0, %v1368
  %v1370 = vpop.f32.mrb[0].mxu0
  %1371 = vmatprep.mubr.f32.mxu0 %v823
  %1372 = vmatmul.mubr.f32.gmra.mrb[0].mxu0 %v822
  %v1373 = vpop.f32.mrb[0].mxu0
  %v1374 = vadd.f32 0.0, %v1373
  %v1375 = vpop.f32.mrb[0].mxu0
  %1376 = vmatprep.mubr.f32.mxu0 %v835
  %1377 = vmatmul.mubr.f32.gmra.mrb[0].mxu0 %v834
  %v1378 = vpop.f32.mrb[0].mxu0
  %v1379 = vadd.f32 0.0, %v1378
  %v1380 = vpop.f32.mrb[0].mxu0
  %1381 = vmatprep.mubr.f32.mxu0 %v847
  %1382 = vmatmul.mubr.f32.gmra.mrb[0].mxu0 %v846
  %v1383 = vpop.f32.mrb[0].mxu0
  %v1384 = vadd.f32 0.0, %v1383
  %v1385 = vpop.f32.mrb[0].mxu0
  %1386 = vmatprep.mubr.f32.mxu0 %v859
  %1387 = vmatmul.mubr.f32.gmra.mrb[0].mxu0 %v858
  %v1388 = vpop.f32.mrb[0].mxu0
  %v1389 = vadd.f32 0.0, %v1388
  %v1390 = vpop.f32.mrb[0].mxu0
  %1391 = vmatprep.mubr.f32.mxu0 %v871
  %1392 = vmatmul.mubr.f32.gmra.mrb[0].mxu0 %v870
  %v1393 = vpop.f32.mrb[0].mxu0
  %v1394 = vadd.f32 0.0, %v1393
  %v1395 = vpop.f32.mrb[0].mxu0
  %1396 = vmatprep.mubr.f32.mxu0 %v883
  %1397 = vmatmul.mubr.f32.gmra.mrb[0].mxu0 %v882
  %v1398 = vpop.f32.mrb[0].mxu0
  %v1399 = vadd.f32 0.0, %v1398
  %v1400 = vpop.f32.mrb[0].mxu0
  %1401 = vmatprep.mubr.f32.mxu0 %v895
  %1402 = vmatmul.mubr.f32.gmra.mrb[0].mxu0 %v894
  %v1403 = vpop.f32.mrb[0].mxu0
  %v1404 = vadd.f32 0.0, %v1403
  %v1405 = vpop.f32.mrb[0].mxu0
  %1406 = vmatprep.mubr.f32.mxu0 %v907
  %1407 = vmatmul.mubr.f32.gmra.mrb[0].mxu0 %v906
  %v1408 = vpop.f32.mrb[0].mxu0
  %v1409 = vadd.f32 0.0, %v1408
  %v1410 = vpop.f32.mrb[0].mxu0
  %1411 = vmatprep.mubr.f32.mxu0 %v919
  %1412 = vmatmul.mubr.f32.gmra.mrb[0].mxu0 %v918
  %v1413 = vpop.f32.mrb[0].mxu0
  %v1414 = vadd.f32 0.0, %v1413
  %v1415 = vpop.f32.mrb[0].mxu0
  %1416 = vmatprep.mubr.f32.mxu0 %v931
  %1417 = vmatmul.mubr.f32.gmra.mrb[0].mxu0 %v930
  %v1418 = vpop.f32.mrb[0].mxu0
  %v1419 = vadd.f32 0.0, %v1418
  %v1420 = vpop.f32.mrb[0].mxu0
  %1421 = vmatprep.mubr.f32.mxu0 %v943
  %1422 = vmatmul.mubr.f32.gmra.mrb[0].mxu0 %v942
  %v1423 = vpop.f32.mrb[0].mxu0
  %v1424 = vadd.f32 0.0, %v1423
  %v1425 = vpop.f32.mrb[0].mxu0
  %1426 = vmatprep.mubr.f32.mxu0 %v955
  %1427 = vmatmul.mubr.f32.gmra.mrb[0].mxu0 %v954
  %v1428 = vpop.f32.mrb[0].mxu0
  %v1429 = vadd.f32 0.0, %v1428
  %v1430 = vpop.f32.mrb[0].mxu0
  %1431 = vmatprep.mubr.f32.mxu0 %v967
  %1432 = vmatmul.mubr.f32.gmra.mrb[0].mxu0 %v966
  %v1433 = vpop.f32.mrb[0].mxu0
  %v1434 = vadd.f32 0.0, %v1433
  %v1435 = vpop.f32.mrb[0].mxu0
  %1436 = vmatprep.mubr.f32.mxu0 %v979
  %1437 = vmatmul.mubr.f32.gmra.mrb[0].mxu0 %v978
  %v1438 = vpop.f32.mrb[0].mxu0
  %v1439 = vadd.f32 0.0, %v1438
  %v1440 = vpop.f32.mrb[0].mxu0
  %1441 = vmatprep.mubr.f32.mxu0 %v991
  %1442 = vmatmul.mubr.f32.gmra.mrb[0].mxu0 %v990
  %v1443 = vpop.f32.mrb[0].mxu0
  %v1444 = vadd.f32 0.0, %v1443
  %v1445 = vpop.f32.mrb[0].mxu0
  %1446 = vmatprep.mubr.f32.mxu0 %v1003
  %1447 = vmatmul.mubr.f32.gmra.mrb[0].mxu0 %v1002
  %v1448 = vpop.f32.mrb[0].mxu0
  %v1449 = vadd.f32 0.0, %v1448
  %v1450 = vpop.f32.mrb[0].mxu0
  %1451 = vmatprep.mubr.f32.mxu0 %v1015
  %1452 = vmatmul.mubr.f32.gmra.mrb[0].mxu0 %v1014
  %v1453 = vpop.f32.mrb[0].mxu0
  %v1454 = vadd.f32 0.0, %v1453
  %v1455 = vpop.f32.mrb[0].mxu0
  %1456 = vmatprep.mubr.f32.mxu0 %v1027
  %1457 = vmatmul.mubr.f32.gmra.mrb[0].mxu0 %v1026
  %v1458 = vpop.f32.mrb[0].mxu0
  %v1459 = vadd.f32 0.0, %v1458
  %v1460 = vpop.f32.mrb[0].mxu0
  %1461 = vmatprep.mubr.f32.mxu0 %v1039
  %1462 = vmatmul.mubr.f32.gmra.mrb[0].mxu0 %v1038
  %v1463 = vpop.f32.mrb[0].mxu0
  %v1464 = vadd.f32 0.0, %v1463
  %v1465 = vpop.f32.mrb[0].mxu0
  %1466 = vdwg.mxu0
  %1467 = vmatprep.subr.mxu0 0.0
  %1468 = vmatpush1.msra.mxu0 %v1082
  %1469 = vmatprep.subr.mxu0 0.0
  %1470 = vmatpush1.msra.mxu0 %v1083
  %1471 = vmatprep.subr.mxu0 0.0
  %1472 = vmatpush1.msra.mxu0 %v1084
  %1473 = vmatprep.subr.mxu0 0.0
  %1474 = vmatpush1.msra.mxu0 %v1085
  %1475 = vmatprep.subr.mxu0 0.0
  %1476 = vmatpush1.msra.mxu0 %v1086
  %1477 = vmatprep.subr.mxu0 0.0
  %1478 = vmatpush1.msra.mxu0 %v1087
  %1479 = vmatprep.subr.mxu0 0.0
  %1480 = vmatpush1.msra.mxu0 %v1088
  %1481 = vmatprep.subr.mxu0 0.0
  %1482 = vmatpush1.msra.mxu0 %v1089
  %1483 = vmatprep.subr.mxu0 0.0
  %1484 = vmatpush1.msra.mxu0 %v1090
  %1485 = vmatprep.subr.mxu0 0.0
  %1486 = vmatpush1.msra.mxu0 %v1091
  %1487 = vmatprep.subr.mxu0 0.0
  %1488 = vmatpush1.msra.mxu0 %v1092
  %1489 = vmatprep.subr.mxu0 0.0
  %1490 = vmatpush1.msra.mxu0 %v1093
  %1491 = vmatprep.subr.mxu0 0.0
  %1492 = vmatpush1.msra.mxu0 %v1094
  %1493 = vmatprep.subr.mxu0 0.0
  %1494 = vmatpush1.msra.mxu0 %v1095
  %1495 = vmatprep.subr.mxu0 0.0
  %1496 = vmatpush1.msra.mxu0 %v1096
  %1497 = vmatprep.subr.mxu0 0.0
  %1498 = vmatpush1.msra.mxu0 %v1097
  %1499 = vmatprep.subr.mxu0 0.0
  %1500 = vmatpush1.msra.mxu0 %v1098
  %1501 = vmatprep.subr.mxu0 0.0
  %1502 = vmatpush1.msra.mxu0 %v1099
  %1503 = vmatprep.subr.mxu0 0.0
  %1504 = vmatpush1.msra.mxu0 %v1100
  %1505 = vmatprep.subr.mxu0 0.0
  %1506 = vmatpush1.msra.mxu0 %v1101
  %1507 = vmatprep.subr.mxu0 0.0
  %1508 = vmatpush1.msra.mxu0 %v1102
  %1509 = vmatprep.subr.mxu0 0.0
  %1510 = vmatpush1.msra.mxu0 %v1103
  %1511 = vmatprep.subr.mxu0 0.0
  %1512 = vmatpush1.msra.mxu0 %v1104
  %1513 = vmatprep.subr.mxu0 0.0
  %1514 = vmatpush1.msra.mxu0 %v1105
  %1515 = vmatprep.subr.mxu0 0.0
  %1516 = vmatpush1.msra.mxu0 %v1106
  %1517 = vmatprep.subr.mxu0 0.0
  %1518 = vmatpush1.msra.mxu0 %v1107
  %1519 = vmatprep.subr.mxu0 0.0
  %1520 = vmatpush1.msra.mxu0 %v1108
  %1521 = vmatprep.subr.mxu0 0.0
  %1522 = vmatpush1.msra.mxu0 %v1109
  %1523 = vmatprep.subr.mxu0 0.0
  %1524 = vmatpush1.msra.mxu0 %v1110
  %1525 = vmatprep.subr.mxu0 0.0
  %1526 = vmatpush1.msra.mxu0 %v1111
  %1527 = vmatprep.subr.mxu0 0.0
  %1528 = vmatpush1.msra.mxu0 %v1112
  %1529 = vmatprep.subr.mxu0 0.0
  %1530 = vmatpush1.msra.mxu0 %v1113
  %1531 = vmatprep.mubr.f32.mxu0 %v669
  %1532 = vmatmul.mubr.f32.gmra.mrb[0].mxu0 %v668
  %v1533 = vpop.f32.mrb[0].mxu0
  %v1534 = vadd.f32 %v1309, %v1533
  %v1535 = vpop.f32.mrb[0].mxu0
  %1536 = vmatprep.mubr.f32.mxu0 %v681
  %1537 = vmatmul.mubr.f32.gmra.mrb[0].mxu0 %v680
  %v1538 = vpop.f32.mrb[0].mxu0
  %v1539 = vadd.f32 %v1314, %v1538
  %v1540 = vpop.f32.mrb[0].mxu0
  %1541 = vmatprep.mubr.f32.mxu0 %v693
  %1542 = vmatmul.mubr.f32.gmra.mrb[0].mxu0 %v692
  %v1543 = vpop.f32.mrb[0].mxu0
  %v1544 = vadd.f32 %v1319, %v1543
  %v1545 = vpop.f32.mrb[0].mxu0
  %1546 = vmatprep.mubr.f32.mxu0 %v705
  %1547 = vmatmul.mubr.f32.gmra.mrb[0].mxu0 %v704
  %v1548 = vpop.f32.mrb[0].mxu0
  %v1549 = vadd.f32 %v1324, %v1548
  %v1550 = vpop.f32.mrb[0].mxu0
  %1551 = vmatprep.mubr.f32.mxu0 %v717
  %1552 = vmatmul.mubr.f32.gmra.mrb[0].mxu0 %v716
  %v1553 = vpop.f32.mrb[0].mxu0
  %v1554 = vadd.f32 %v1329, %v1553
  %v1555 = vpop.f32.mrb[0].mxu0
  %1556 = vmatprep.mubr.f32.mxu0 %v729
  %1557 = vmatmul.mubr.f32.gmra.mrb[0].mxu0 %v728
  %v1558 = vpop.f32.mrb[0].mxu0
  %v1559 = vadd.f32 %v1334, %v1558
  %v1560 = vpop.f32.mrb[0].mxu0
  %1561 = vmatprep.mubr.f32.mxu0 %v741
  %1562 = vmatmul.mubr.f32.gmra.mrb[0].mxu0 %v740
  %v1563 = vpop.f32.mrb[0].mxu0
  %v1564 = vadd.f32 %v1339, %v1563
  %v1565 = vpop.f32.mrb[0].mxu0
  %1566 = vmatprep.mubr.f32.mxu0 %v753
  %1567 = vmatmul.mubr.f32.gmra.mrb[0].mxu0 %v752
  %v1568 = vpop.f32.mrb[0].mxu0
  %v1569 = vadd.f32 %v1344, %v1568
  %v1570 = vpop.f32.mrb[0].mxu0
  %1571 = vmatprep.mubr.f32.mxu0 %v765
  %1572 = vmatmul.mubr.f32.gmra.mrb[0].mxu0 %v764
  %v1573 = vpop.f32.mrb[0].mxu0
  %v1574 = vadd.f32 %v1349, %v1573
  %v1575 = vpop.f32.mrb[0].mxu0
  %1576 = vmatprep.mubr.f32.mxu0 %v777
  %1577 = vmatmul.mubr.f32.gmra.mrb[0].mxu0 %v776
  %v1578 = vpop.f32.mrb[0].mxu0
  %v1579 = vadd.f32 %v1354, %v1578
  %v1580 = vpop.f32.mrb[0].mxu0
  %1581 = vmatprep.mubr.f32.mxu0 %v789
  %1582 = vmatmul.mubr.f32.gmra.mrb[0].mxu0 %v788
  %v1583 = vpop.f32.mrb[0].mxu0
  %v1584 = vadd.f32 %v1359, %v1583
  %v1585 = vpop.f32.mrb[0].mxu0
  %1586 = vmatprep.mubr.f32.mxu0 %v801
  %1587 = vmatmul.mubr.f32.gmra.mrb[0].mxu0 %v800
  %v1588 = vpop.f32.mrb[0].mxu0
  %v1589 = vadd.f32 %v1364, %v1588
  %v1590 = vpop.f32.mrb[0].mxu0
  %1591 = vmatprep.mubr.f32.mxu0 %v813
  %1592 = vmatmul.mubr.f32.gmra.mrb[0].mxu0 %v812
  %v1593 = vpop.f32.mrb[0].mxu0
  %v1594 = vadd.f32 %v1369, %v1593
  %v1595 = vpop.f32.mrb[0].mxu0
  %1596 = vmatprep.mubr.f32.mxu0 %v825
  %1597 = vmatmul.mubr.f32.gmra.mrb[0].mxu0 %v824
  %v1598 = vpop.f32.mrb[0].mxu0
  %v1599 = vadd.f32 %v1374, %v1598
  %v1600 = vpop.f32.mrb[0].mxu0
  %1601 = vmatprep.mubr.f32.mxu0 %v837
  %1602 = vmatmul.mubr.f32.gmra.mrb[0].mxu0 %v836
  %v1603 = vpop.f32.mrb[0].mxu0
  %v1604 = vadd.f32 %v1379, %v1603
  %v1605 = vpop.f32.mrb[0].mxu0
  %1606 = vmatprep.mubr.f32.mxu0 %v849
  %1607 = vmatmul.mubr.f32.gmra.mrb[0].mxu0 %v848
  %v1608 = vpop.f32.mrb[0].mxu0
  %v1609 = vadd.f32 %v1384, %v1608
  %v1610 = vpop.f32.mrb[0].mxu0
  %1611 = vmatprep.mubr.f32.mxu0 %v861
  %1612 = vmatmul.mubr.f32.gmra.mrb[0].mxu0 %v860
  %v1613 = vpop.f32.mrb[0].mxu0
  %v1614 = vadd.f32 %v1389, %v1613
  %v1615 = vpop.f32.mrb[0].mxu0
  %1616 = vmatprep.mubr.f32.mxu0 %v873
  %1617 = vmatmul.mubr.f32.gmra.mrb[0].mxu0 %v872
  %v1618 = vpop.f32.mrb[0].mxu0
  %v1619 = vadd.f32 %v1394, %v1618
  %v1620 = vpop.f32.mrb[0].mxu0
  %1621 = vmatprep.mubr.f32.mxu0 %v885
  %1622 = vmatmul.mubr.f32.gmra.mrb[0].mxu0 %v884
  %v1623 = vpop.f32.mrb[0].mxu0
  %v1624 = vadd.f32 %v1399, %v1623
  %v1625 = vpop.f32.mrb[0].mxu0
  %1626 = vmatprep.mubr.f32.mxu0 %v897
  %1627 = vmatmul.mubr.f32.gmra.mrb[0].mxu0 %v896
  %v1628 = vpop.f32.mrb[0].mxu0
  %v1629 = vadd.f32 %v1404, %v1628
  %v1630 = vpop.f32.mrb[0].mxu0
  %1631 = vmatprep.mubr.f32.mxu0 %v909
  %1632 = vmatmul.mubr.f32.gmra.mrb[0].mxu0 %v908
  %v1633 = vpop.f32.mrb[0].mxu0
  %v1634 = vadd.f32 %v1409, %v1633
  %v1635 = vpop.f32.mrb[0].mxu0
  %1636 = vmatprep.mubr.f32.mxu0 %v921
  %1637 = vmatmul.mubr.f32.gmra.mrb[0].mxu0 %v920
  %v1638 = vpop.f32.mrb[0].mxu0
  %v1639 = vadd.f32 %v1414, %v1638
  %v1640 = vpop.f32.mrb[0].mxu0
  %1641 = vmatprep.mubr.f32.mxu0 %v933
  %1642 = vmatmul.mubr.f32.gmra.mrb[0].mxu0 %v932
  %v1643 = vpop.f32.mrb[0].mxu0
  %v1644 = vadd.f32 %v1419, %v1643
  %v1645 = vpop.f32.mrb[0].mxu0
  %1646 = vmatprep.mubr.f32.mxu0 %v945
  %1647 = vmatmul.mubr.f32.gmra.mrb[0].mxu0 %v944
  %v1648 = vpop.f32.mrb[0].mxu0
  %v1649 = vadd.f32 %v1424, %v1648
  %v1650 = vpop.f32.mrb[0].mxu0
  %1651 = vmatprep.mubr.f32.mxu0 %v957
  %1652 = vmatmul.mubr.f32.gmra.mrb[0].mxu0 %v956
  %v1653 = vpop.f32.mrb[0].mxu0
  %v1654 = vadd.f32 %v1429, %v1653
  %v1655 = vpop.f32.mrb[0].mxu0
  %1656 = vmatprep.mubr.f32.mxu0 %v969
  %1657 = vmatmul.mubr.f32.gmra.mrb[0].mxu0 %v968
  %v1658 = vpop.f32.mrb[0].mxu0
  %v1659 = vadd.f32 %v1434, %v1658
  %v1660 = vpop.f32.mrb[0].mxu0
  %1661 = vmatprep.mubr.f32.mxu0 %v981
  %1662 = vmatmul.mubr.f32.gmra.mrb[0].mxu0 %v980
  %v1663 = vpop.f32.mrb[0].mxu0
  %v1664 = vadd.f32 %v1439, %v1663
  %v1665 = vpop.f32.mrb[0].mxu0
  %1666 = vmatprep.mubr.f32.mxu0 %v993
  %1667 = vmatmul.mubr.f32.gmra.mrb[0].mxu0 %v992
  %v1668 = vpop.f32.mrb[0].mxu0
  %v1669 = vadd.f32 %v1444, %v1668
  %v1670 = vpop.f32.mrb[0].mxu0
  %1671 = vmatprep.mubr.f32.mxu0 %v1005
  %1672 = vmatmul.mubr.f32.gmra.mrb[0].mxu0 %v1004
  %v1673 = vpop.f32.mrb[0].mxu0
  %v1674 = vadd.f32 %v1449, %v1673
  %v1675 = vpop.f32.mrb[0].mxu0
  %1676 = vmatprep.mubr.f32.mxu0 %v1017
  %1677 = vmatmul.mubr.f32.gmra.mrb[0].mxu0 %v1016
  %v1678 = vpop.f32.mrb[0].mxu0
  %v1679 = vadd.f32 %v1454, %v1678
  %v1680 = vpop.f32.mrb[0].mxu0
  %1681 = vmatprep.mubr.f32.mxu0 %v1029
  %1682 = vmatmul.mubr.f32.gmra.mrb[0].mxu0 %v1028
  %v1683 = vpop.f32.mrb[0].mxu0
  %v1684 = vadd.f32 %v1459, %v1683
  %v1685 = vpop.f32.mrb[0].mxu0
  %1686 = vmatprep.mubr.f32.mxu0 %v1041
  %1687 = vmatmul.mubr.f32.gmra.mrb[0].mxu0 %v1040
  %v1688 = vpop.f32.mrb[0].mxu0
  %v1689 = vadd.f32 %v1464, %v1688
  %v1690 = vpop.f32.mrb[0].mxu0
  %1691 = vdwg.mxu0
  %1692 = vmatprep.subr.mxu0 0.0
  %1693 = vmatpush1.msra.mxu0 %v1114
  %1694 = vmatprep.subr.mxu0 0.0
  %1695 = vmatpush1.msra.mxu0 %v1115
  %1696 = vmatprep.subr.mxu0 0.0
  %1697 = vmatpush1.msra.mxu0 %v1116
  %1698 = vmatprep.subr.mxu0 0.0
  %1699 = vmatpush1.msra.mxu0 %v1117
  %1700 = vmatprep.subr.mxu0 0.0
  %1701 = vmatpush1.msra.mxu0 %v1118
  %1702 = vmatprep.subr.mxu0 0.0
  %1703 = vmatpush1.msra.mxu0 %v1119
  %1704 = vmatprep.subr.mxu0 0.0
  %1705 = vmatpush1.msra.mxu0 %v1120
  %1706 = vmatprep.subr.mxu0 0.0
  %1707 = vmatpush1.msra.mxu0 %v1121
  %1708 = vmatprep.subr.mxu0 0.0
  %1709 = vmatpush1.msra.mxu0 %v1122
  %1710 = vmatprep.subr.mxu0 0.0
  %1711 = vmatpush1.msra.mxu0 %v1123
  %1712 = vmatprep.subr.mxu0 0.0
  %1713 = vmatpush1.msra.mxu0 %v1124
  %1714 = vmatprep.subr.mxu0 0.0
  %1715 = vmatpush1.msra.mxu0 %v1125
  %1716 = vmatprep.subr.mxu0 0.0
  %1717 = vmatpush1.msra.mxu0 %v1126
  %1718 = vmatprep.subr.mxu0 0.0
  %1719 = vmatpush1.msra.mxu0 %v1127
  %1720 = vmatprep.subr.mxu0 0.0
  %1721 = vmatpush1.msra.mxu0 %v1128
  %1722 = vmatprep.subr.mxu0 0.0
  %1723 = vmatpush1.msra.mxu0 %v1129
  %1724 = vmatprep.subr.mxu0 0.0
  %1725 = vmatpush1.msra.mxu0 %v1130
  %1726 = vmatprep.subr.mxu0 0.0
  %1727 = vmatpush1.msra.mxu0 %v1131
  %1728 = vmatprep.subr.mxu0 0.0
  %1729 = vmatpush1.msra.mxu0 %v1132
  %1730 = vmatprep.subr.mxu0 0.0
  %1731 = vmatpush1.msra.mxu0 %v1133
  %1732 = vmatprep.subr.mxu0 0.0
  %1733 = vmatpush1.msra.mxu0 %v1134
  %1734 = vmatprep.subr.mxu0 0.0
  %1735 = vmatpush1.msra.mxu0 %v1135
  %1736 = vmatprep.subr.mxu0 0.0
  %1737 = vmatpush1.msra.mxu0 %v1136
  %1738 = vmatprep.subr.mxu0 0.0
  %1739 = vmatpush1.msra.mxu0 %v1137
  %1740 = vmatprep.subr.mxu0 0.0
  %1741 = vmatpush1.msra.mxu0 %v1138
  %1742 = vmatprep.subr.mxu0 0.0
  %1743 = vmatpush1.msra.mxu0 %v1139
  %1744 = vmatprep.subr.mxu0 0.0
  %1745 = vmatpush1.msra.mxu0 %v1140
  %1746 = vmatprep.subr.mxu0 0.0
  %1747 = vmatpush1.msra.mxu0 %v1141
  %1748 = vmatprep.subr.mxu0 0.0
  %1749 = vmatpush1.msra.mxu0 %v1142
  %1750 = vmatprep.subr.mxu0 0.0
  %1751 = vmatpush1.msra.mxu0 %v1143
  %1752 = vmatprep.subr.mxu0 0.0
  %1753 = vmatpush1.msra.mxu0 %v1144
  %1754 = vmatprep.subr.mxu0 0.0
  %1755 = vmatpush1.msra.mxu0 %v1145
  %1756 = vmatprep.mubr.f32.mxu0 %v671
  %1757 = vmatmul.mubr.f32.gmra.mrb[0].mxu0 %v670
  %v1758 = vpop.f32.mrb[0].mxu0
  %v1759 = vadd.f32 %v1534, %v1758
  %v1760 = vpop.f32.mrb[0].mxu0
  %1761 = vmatprep.mubr.f32.mxu0 %v683
  %1762 = vmatmul.mubr.f32.gmra.mrb[0].mxu0 %v682
  %v1763 = vpop.f32.mrb[0].mxu0
  %v1764 = vadd.f32 %v1539, %v1763
  %v1765 = vpop.f32.mrb[0].mxu0
  %1766 = vmatprep.mubr.f32.mxu0 %v695
  %1767 = vmatmul.mubr.f32.gmra.mrb[0].mxu0 %v694
  %v1768 = vpop.f32.mrb[0].mxu0
  %v1769 = vadd.f32 %v1544, %v1768
  %v1770 = vpop.f32.mrb[0].mxu0
  %1771 = vmatprep.mubr.f32.mxu0 %v707
  %1772 = vmatmul.mubr.f32.gmra.mrb[0].mxu0 %v706
  %v1773 = vpop.f32.mrb[0].mxu0
  %v1774 = vadd.f32 %v1549, %v1773
  %v1775 = vpop.f32.mrb[0].mxu0
  %1776 = vmatprep.mubr.f32.mxu0 %v719
  %1777 = vmatmul.mubr.f32.gmra.mrb[0].mxu0 %v718
  %v1778 = vpop.f32.mrb[0].mxu0
  %v1779 = vadd.f32 %v1554, %v1778
  %v1780 = vpop.f32.mrb[0].mxu0
  %1781 = vmatprep.mubr.f32.mxu0 %v731
  %1782 = vmatmul.mubr.f32.gmra.mrb[0].mxu0 %v730
  %v1783 = vpop.f32.mrb[0].mxu0
  %v1784 = vadd.f32 %v1559, %v1783
  %v1785 = vpop.f32.mrb[0].mxu0
  %1786 = vmatprep.mubr.f32.mxu0 %v743
  %1787 = vmatmul.mubr.f32.gmra.mrb[0].mxu0 %v742
  %v1788 = vpop.f32.mrb[0].mxu0
  %v1789 = vadd.f32 %v1564, %v1788
  %v1790 = vpop.f32.mrb[0].mxu0
  %1791 = vmatprep.mubr.f32.mxu0 %v755
  %1792 = vmatmul.mubr.f32.gmra.mrb[0].mxu0 %v754
  %v1793 = vpop.f32.mrb[0].mxu0
  %v1794 = vadd.f32 %v1569, %v1793
  %v1795 = vpop.f32.mrb[0].mxu0
  %1796 = vmatprep.mubr.f32.mxu0 %v767
  %1797 = vmatmul.mubr.f32.gmra.mrb[0].mxu0 %v766
  %v1798 = vpop.f32.mrb[0].mxu0
  %v1799 = vadd.f32 %v1574, %v1798
  %v1800 = vpop.f32.mrb[0].mxu0
  %1801 = vmatprep.mubr.f32.mxu0 %v779
  %1802 = vmatmul.mubr.f32.gmra.mrb[0].mxu0 %v778
  %v1803 = vpop.f32.mrb[0].mxu0
  %v1804 = vadd.f32 %v1579, %v1803
  %v1805 = vpop.f32.mrb[0].mxu0
  %1806 = vmatprep.mubr.f32.mxu0 %v791
  %1807 = vmatmul.mubr.f32.gmra.mrb[0].mxu0 %v790
  %v1808 = vpop.f32.mrb[0].mxu0
  %v1809 = vadd.f32 %v1584, %v1808
  %v1810 = vpop.f32.mrb[0].mxu0
  %1811 = vmatprep.mubr.f32.mxu0 %v803
  %1812 = vmatmul.mubr.f32.gmra.mrb[0].mxu0 %v802
  %v1813 = vpop.f32.mrb[0].mxu0
  %v1814 = vadd.f32 %v1589, %v1813
  %v1815 = vpop.f32.mrb[0].mxu0
  %1816 = vmatprep.mubr.f32.mxu0 %v815
  %1817 = vmatmul.mubr.f32.gmra.mrb[0].mxu0 %v814
  %v1818 = vpop.f32.mrb[0].mxu0
  %v1819 = vadd.f32 %v1594, %v1818
  %v1820 = vpop.f32.mrb[0].mxu0
  %1821 = vmatprep.mubr.f32.mxu0 %v827
  %1822 = vmatmul.mubr.f32.gmra.mrb[0].mxu0 %v826
  %v1823 = vpop.f32.mrb[0].mxu0
  %v1824 = vadd.f32 %v1599, %v1823
  %v1825 = vpop.f32.mrb[0].mxu0
  %1826 = vmatprep.mubr.f32.mxu0 %v839
  %1827 = vmatmul.mubr.f32.gmra.mrb[0].mxu0 %v838
  %v1828 = vpop.f32.mrb[0].mxu0
  %v1829 = vadd.f32 %v1604, %v1828
  %v1830 = vpop.f32.mrb[0].mxu0
  %1831 = vmatprep.mubr.f32.mxu0 %v851
  %1832 = vmatmul.mubr.f32.gmra.mrb[0].mxu0 %v850
  %v1833 = vpop.f32.mrb[0].mxu0
  %v1834 = vadd.f32 %v1609, %v1833
  %v1835 = vpop.f32.mrb[0].mxu0
  %1836 = vmatprep.mubr.f32.mxu0 %v863
  %1837 = vmatmul.mubr.f32.gmra.mrb[0].mxu0 %v862
  %v1838 = vpop.f32.mrb[0].mxu0
  %v1839 = vadd.f32 %v1614, %v1838
  %v1840 = vpop.f32.mrb[0].mxu0
  %1841 = vmatprep.mubr.f32.mxu0 %v875
  %1842 = vmatmul.mubr.f32.gmra.mrb[0].mxu0 %v874
  %v1843 = vpop.f32.mrb[0].mxu0
  %v1844 = vadd.f32 %v1619, %v1843
  %v1845 = vpop.f32.mrb[0].mxu0
  %1846 = vmatprep.mubr.f32.mxu0 %v887
  %1847 = vmatmul.mubr.f32.gmra.mrb[0].mxu0 %v886
  %v1848 = vpop.f32.mrb[0].mxu0
  %v1849 = vadd.f32 %v1624, %v1848
  %v1850 = vpop.f32.mrb[0].mxu0
  %1851 = vmatprep.mubr.f32.mxu0 %v899
  %1852 = vmatmul.mubr.f32.gmra.mrb[0].mxu0 %v898
  %v1853 = vpop.f32.mrb[0].mxu0
  %v1854 = vadd.f32 %v1629, %v1853
  %v1855 = vpop.f32.mrb[0].mxu0
  %1856 = vmatprep.mubr.f32.mxu0 %v911
  %1857 = vmatmul.mubr.f32.gmra.mrb[0].mxu0 %v910
  %v1858 = vpop.f32.mrb[0].mxu0
  %v1859 = vadd.f32 %v1634, %v1858
  %v1860 = vpop.f32.mrb[0].mxu0
  %1861 = vmatprep.mubr.f32.mxu0 %v923
  %1862 = vmatmul.mubr.f32.gmra.mrb[0].mxu0 %v922
  %v1863 = vpop.f32.mrb[0].mxu0
  %v1864 = vadd.f32 %v1639, %v1863
  %v1865 = vpop.f32.mrb[0].mxu0
  %1866 = vmatprep.mubr.f32.mxu0 %v935
  %1867 = vmatmul.mubr.f32.gmra.mrb[0].mxu0 %v934
  %v1868 = vpop.f32.mrb[0].mxu0
  %v1869 = vadd.f32 %v1644, %v1868
  %v1870 = vpop.f32.mrb[0].mxu0
  %1871 = vmatprep.mubr.f32.mxu0 %v947
  %1872 = vmatmul.mubr.f32.gmra.mrb[0].mxu0 %v946
  %v1873 = vpop.f32.mrb[0].mxu0
  %v1874 = vadd.f32 %v1649, %v1873
  %v1875 = vpop.f32.mrb[0].mxu0
  %1876 = vmatprep.mubr.f32.mxu0 %v959
  %1877 = vmatmul.mubr.f32.gmra.mrb[0].mxu0 %v958
  %v1878 = vpop.f32.mrb[0].mxu0
  %v1879 = vadd.f32 %v1654, %v1878
  %v1880 = vpop.f32.mrb[0].mxu0
  %1881 = vmatprep.mubr.f32.mxu0 %v971
  %1882 = vmatmul.mubr.f32.gmra.mrb[0].mxu0 %v970
  %v1883 = vpop.f32.mrb[0].mxu0
  %v1884 = vadd.f32 %v1659, %v1883
  %v1885 = vpop.f32.mrb[0].mxu0
  %1886 = vmatprep.mubr.f32.mxu0 %v983
  %1887 = vmatmul.mubr.f32.gmra.mrb[0].mxu0 %v982
  %v1888 = vpop.f32.mrb[0].mxu0
  %v1889 = vadd.f32 %v1664, %v1888
  %v1890 = vpop.f32.mrb[0].mxu0
  %1891 = vmatprep.mubr.f32.mxu0 %v995
  %1892 = vmatmul.mubr.f32.gmra.mrb[0].mxu0 %v994
  %v1893 = vpop.f32.mrb[0].mxu0
  %v1894 = vadd.f32 %v1669, %v1893
  %v1895 = vpop.f32.mrb[0].mxu0
  %1896 = vmatprep.mubr.f32.mxu0 %v1007
  %1897 = vmatmul.mubr.f32.gmra.mrb[0].mxu0 %v1006
  %v1898 = vpop.f32.mrb[0].mxu0
  %v1899 = vadd.f32 %v1674, %v1898
  %v1900 = vpop.f32.mrb[0].mxu0
  %1901 = vmatprep.mubr.f32.mxu0 %v1019
  %1902 = vmatmul.mubr.f32.gmra.mrb[0].mxu0 %v1018
  %v1903 = vpop.f32.mrb[0].mxu0
  %v1904 = vadd.f32 %v1679, %v1903
  %v1905 = vpop.f32.mrb[0].mxu0
  %1906 = vmatprep.mubr.f32.mxu0 %v1031
  %1907 = vmatmul.mubr.f32.gmra.mrb[0].mxu0 %v1030
  %v1908 = vpop.f32.mrb[0].mxu0
  %v1909 = vadd.f32 %v1684, %v1908
  %v1910 = vpop.f32.mrb[0].mxu0
  %1911 = vmatprep.mubr.f32.mxu0 %v1043
  %1912 = vmatmul.mubr.f32.gmra.mrb[0].mxu0 %v1042
  %v1913 = vpop.f32.mrb[0].mxu0
  %v1914 = vadd.f32 %v1689, %v1913
  %v1915 = vpop.f32.mrb[0].mxu0
  %1916 = vdwg.mxu0
  %1917 = vmatprep.subr.mxu0 0.0
  %1918 = vmatpush1.msra.mxu0 %v1146
  %1919 = vmatprep.subr.mxu0 0.0
  %1920 = vmatpush1.msra.mxu0 %v1147
  %1921 = vmatprep.subr.mxu0 0.0
  %1922 = vmatpush1.msra.mxu0 %v1148
  %1923 = vmatprep.subr.mxu0 0.0
  %1924 = vmatpush1.msra.mxu0 %v1149
  %1925 = vmatprep.subr.mxu0 0.0
  %1926 = vmatpush1.msra.mxu0 %v1150
  %1927 = vmatprep.subr.mxu0 0.0
  %1928 = vmatpush1.msra.mxu0 %v1151
  %1929 = vmatprep.subr.mxu0 0.0
  %1930 = vmatpush1.msra.mxu0 %v1152
  %1931 = vmatprep.subr.mxu0 0.0
  %1932 = vmatpush1.msra.mxu0 %v1153
  %1933 = vmatprep.subr.mxu0 0.0
  %1934 = vmatpush1.msra.mxu0 %v1154
  %1935 = vmatprep.subr.mxu0 0.0
  %1936 = vmatpush1.msra.mxu0 %v1155
  %1937 = vmatprep.subr.mxu0 0.0
  %1938 = vmatpush1.msra.mxu0 %v1156
  %1939 = vmatprep.subr.mxu0 0.0
  %1940 = vmatpush1.msra.mxu0 %v1157
  %1941 = vmatprep.subr.mxu0 0.0
  %1942 = vmatpush1.msra.mxu0 %v1158
  %1943 = vmatprep.subr.mxu0 0.0
  %1944 = vmatpush1.msra.mxu0 %v1159
  %1945 = vmatprep.subr.mxu0 0.0
  %1946 = vmatpush1.msra.mxu0 %v1160
  %1947 = vmatprep.subr.mxu0 0.0
  %1948 = vmatpush1.msra.mxu0 %v1161
  %1949 = vmatprep.subr.mxu0 0.0
  %1950 = vmatpush1.msra.mxu0 %v1162
  %1951 = vmatprep.subr.mxu0 0.0
  %1952 = vmatpush1.msra.mxu0 %v1163
  %1953 = vmatprep.subr.mxu0 0.0
  %1954 = vmatpush1.msra.mxu0 %v1164
  %1955 = vmatprep.subr.mxu0 0.0
  %1956 = vmatpush1.msra.mxu0 %v1165
  %1957 = vmatprep.subr.mxu0 0.0
  %1958 = vmatpush1.msra.mxu0 %v1166
  %1959 = vmatprep.subr.mxu0 0.0
  %1960 = vmatpush1.msra.mxu0 %v1167
  %1961 = vmatprep.subr.mxu0 0.0
  %1962 = vmatpush1.msra.mxu0 %v1168
  %1963 = vmatprep.subr.mxu0 0.0
  %1964 = vmatpush1.msra.mxu0 %v1169
  %1965 = vmatprep.subr.mxu0 0.0
  %1966 = vmatpush1.msra.mxu0 %v1170
  %1967 = vmatprep.subr.mxu0 0.0
  %1968 = vmatpush1.msra.mxu0 %v1171
  %1969 = vmatprep.subr.mxu0 0.0
  %1970 = vmatpush1.msra.mxu0 %v1172
  %1971 = vmatprep.subr.mxu0 0.0
  %1972 = vmatpush1.msra.mxu0 %v1173
  %1973 = vmatprep.subr.mxu0 0.0
  %1974 = vmatpush1.msra.mxu0 %v1174
  %1975 = vmatprep.subr.mxu0 0.0
  %1976 = vmatpush1.msra.mxu0 %v1175
  %1977 = vmatprep.subr.mxu0 0.0
  %1978 = vmatpush1.msra.mxu0 %v1176
  %1979 = vmatprep.subr.mxu0 0.0
  %1980 = vmatpush1.msra.mxu0 %v1177
  %1981 = vmatprep.mubr.f32.mxu0 %v673
  %1982 = vmatmul.mubr.f32.gmra.mrb[0].mxu0 %v672
  %v1983 = vpop.f32.mrb[0].mxu0
  %v1984 = vadd.f32 %v1759, %v1983
  %v1985 = vpop.f32.mrb[0].mxu0
  %1986 = vmatprep.mubr.f32.mxu0 %v685
  %1987 = vmatmul.mubr.f32.gmra.mrb[0].mxu0 %v684
  %v1988 = vpop.f32.mrb[0].mxu0
  %v1989 = vadd.f32 %v1764, %v1988
  %v1990 = vpop.f32.mrb[0].mxu0
  %1991 = vmatprep.mubr.f32.mxu0 %v697
  %1992 = vmatmul.mubr.f32.gmra.mrb[0].mxu0 %v696
  %v1993 = vpop.f32.mrb[0].mxu0
  %v1994 = vadd.f32 %v1769, %v1993
  %v1995 = vpop.f32.mrb[0].mxu0
  %1996 = vmatprep.mubr.f32.mxu0 %v709
  %1997 = vmatmul.mubr.f32.gmra.mrb[0].mxu0 %v708
  %v1998 = vpop.f32.mrb[0].mxu0
  %v1999 = vadd.f32 %v1774, %v1998
  %v2000 = vpop.f32.mrb[0].mxu0
  %2001 = vmatprep.mubr.f32.mxu0 %v721
  %2002 = vmatmul.mubr.f32.gmra.mrb[0].mxu0 %v720
  %v2003 = vpop.f32.mrb[0].mxu0
  %v2004 = vadd.f32 %v1779, %v2003
  %v2005 = vpop.f32.mrb[0].mxu0
  %2006 = vmatprep.mubr.f32.mxu0 %v733
  %2007 = vmatmul.mubr.f32.gmra.mrb[0].mxu0 %v732
  %v2008 = vpop.f32.mrb[0].mxu0
  %v2009 = vadd.f32 %v1784, %v2008
  %v2010 = vpop.f32.mrb[0].mxu0
  %2011 = vmatprep.mubr.f32.mxu0 %v745
  %2012 = vmatmul.mubr.f32.gmra.mrb[0].mxu0 %v744
  %v2013 = vpop.f32.mrb[0].mxu0
  %v2014 = vadd.f32 %v1789, %v2013
  %v2015 = vpop.f32.mrb[0].mxu0
  %2016 = vmatprep.mubr.f32.mxu0 %v757
  %2017 = vmatmul.mubr.f32.gmra.mrb[0].mxu0 %v756
  %v2018 = vpop.f32.mrb[0].mxu0
  %v2019 = vadd.f32 %v1794, %v2018
  %v2020 = vpop.f32.mrb[0].mxu0
  %2021 = vmatprep.mubr.f32.mxu0 %v769
  %2022 = vmatmul.mubr.f32.gmra.mrb[0].mxu0 %v768
  %v2023 = vpop.f32.mrb[0].mxu0
  %v2024 = vadd.f32 %v1799, %v2023
  %v2025 = vpop.f32.mrb[0].mxu0
  %2026 = vmatprep.mubr.f32.mxu0 %v781
  %2027 = vmatmul.mubr.f32.gmra.mrb[0].mxu0 %v780
  %v2028 = vpop.f32.mrb[0].mxu0
  %v2029 = vadd.f32 %v1804, %v2028
  %v2030 = vpop.f32.mrb[0].mxu0
  %2031 = vmatprep.mubr.f32.mxu0 %v793
  %2032 = vmatmul.mubr.f32.gmra.mrb[0].mxu0 %v792
  %v2033 = vpop.f32.mrb[0].mxu0
  %v2034 = vadd.f32 %v1809, %v2033
  %v2035 = vpop.f32.mrb[0].mxu0
  %2036 = vmatprep.mubr.f32.mxu0 %v805
  %2037 = vmatmul.mubr.f32.gmra.mrb[0].mxu0 %v804
  %v2038 = vpop.f32.mrb[0].mxu0
  %v2039 = vadd.f32 %v1814, %v2038
  %v2040 = vpop.f32.mrb[0].mxu0
  %2041 = vmatprep.mubr.f32.mxu0 %v817
  %2042 = vmatmul.mubr.f32.gmra.mrb[0].mxu0 %v816
  %v2043 = vpop.f32.mrb[0].mxu0
  %v2044 = vadd.f32 %v1819, %v2043
  %v2045 = vpop.f32.mrb[0].mxu0
  %2046 = vmatprep.mubr.f32.mxu0 %v829
  %2047 = vmatmul.mubr.f32.gmra.mrb[0].mxu0 %v828
  %v2048 = vpop.f32.mrb[0].mxu0
  %v2049 = vadd.f32 %v1824, %v2048
  %v2050 = vpop.f32.mrb[0].mxu0
  %2051 = vmatprep.mubr.f32.mxu0 %v841
  %2052 = vmatmul.mubr.f32.gmra.mrb[0].mxu0 %v840
  %v2053 = vpop.f32.mrb[0].mxu0
  %v2054 = vadd.f32 %v1829, %v2053
  %v2055 = vpop.f32.mrb[0].mxu0
  %2056 = vmatprep.mubr.f32.mxu0 %v853
  %2057 = vmatmul.mubr.f32.gmra.mrb[0].mxu0 %v852
  %v2058 = vpop.f32.mrb[0].mxu0
  %v2059 = vadd.f32 %v1834, %v2058
  %v2060 = vpop.f32.mrb[0].mxu0
  %2061 = vmatprep.mubr.f32.mxu0 %v865
  %2062 = vmatmul.mubr.f32.gmra.mrb[0].mxu0 %v864
  %v2063 = vpop.f32.mrb[0].mxu0
  %v2064 = vadd.f32 %v1839, %v2063
  %v2065 = vpop.f32.mrb[0].mxu0
  %2066 = vmatprep.mubr.f32.mxu0 %v877
  %2067 = vmatmul.mubr.f32.gmra.mrb[0].mxu0 %v876
  %v2068 = vpop.f32.mrb[0].mxu0
  %v2069 = vadd.f32 %v1844, %v2068
  %v2070 = vpop.f32.mrb[0].mxu0
  %2071 = vmatprep.mubr.f32.mxu0 %v889
  %2072 = vmatmul.mubr.f32.gmra.mrb[0].mxu0 %v888
  %v2073 = vpop.f32.mrb[0].mxu0
  %v2074 = vadd.f32 %v1849, %v2073
  %v2075 = vpop.f32.mrb[0].mxu0
  %2076 = vmatprep.mubr.f32.mxu0 %v901
  %2077 = vmatmul.mubr.f32.gmra.mrb[0].mxu0 %v900
  %v2078 = vpop.f32.mrb[0].mxu0
  %v2079 = vadd.f32 %v1854, %v2078
  %v2080 = vpop.f32.mrb[0].mxu0
  %2081 = vmatprep.mubr.f32.mxu0 %v913
  %2082 = vmatmul.mubr.f32.gmra.mrb[0].mxu0 %v912
  %v2083 = vpop.f32.mrb[0].mxu0
  %v2084 = vadd.f32 %v1859, %v2083
  %v2085 = vpop.f32.mrb[0].mxu0
  %2086 = vmatprep.mubr.f32.mxu0 %v925
  %2087 = vmatmul.mubr.f32.gmra.mrb[0].mxu0 %v924
  %v2088 = vpop.f32.mrb[0].mxu0
  %v2089 = vadd.f32 %v1864, %v2088
  %v2090 = vpop.f32.mrb[0].mxu0
  %2091 = vmatprep.mubr.f32.mxu0 %v937
  %2092 = vmatmul.mubr.f32.gmra.mrb[0].mxu0 %v936
  %v2093 = vpop.f32.mrb[0].mxu0
  %v2094 = vadd.f32 %v1869, %v2093
  %v2095 = vpop.f32.mrb[0].mxu0
  %2096 = vmatprep.mubr.f32.mxu0 %v949
  %2097 = vmatmul.mubr.f32.gmra.mrb[0].mxu0 %v948
  %v2098 = vpop.f32.mrb[0].mxu0
  %v2099 = vadd.f32 %v1874, %v2098
  %v2100 = vpop.f32.mrb[0].mxu0
  %2101 = vmatprep.mubr.f32.mxu0 %v961
  %2102 = vmatmul.mubr.f32.gmra.mrb[0].mxu0 %v960
  %v2103 = vpop.f32.mrb[0].mxu0
  %v2104 = vadd.f32 %v1879, %v2103
  %v2105 = vpop.f32.mrb[0].mxu0
  %2106 = vmatprep.mubr.f32.mxu0 %v973
  %2107 = vmatmul.mubr.f32.gmra.mrb[0].mxu0 %v972
  %v2108 = vpop.f32.mrb[0].mxu0
  %v2109 = vadd.f32 %v1884, %v2108
  %v2110 = vpop.f32.mrb[0].mxu0
  %2111 = vmatprep.mubr.f32.mxu0 %v985
  %2112 = vmatmul.mubr.f32.gmra.mrb[0].mxu0 %v984
  %v2113 = vpop.f32.mrb[0].mxu0
  %v2114 = vadd.f32 %v1889, %v2113
  %v2115 = vpop.f32.mrb[0].mxu0
  %2116 = vmatprep.mubr.f32.mxu0 %v997
  %2117 = vmatmul.mubr.f32.gmra.mrb[0].mxu0 %v996
  %v2118 = vpop.f32.mrb[0].mxu0
  %v2119 = vadd.f32 %v1894, %v2118
  %v2120 = vpop.f32.mrb[0].mxu0
  %2121 = vmatprep.mubr.f32.mxu0 %v1009
  %2122 = vmatmul.mubr.f32.gmra.mrb[0].mxu0 %v1008
  %v2123 = vpop.f32.mrb[0].mxu0
  %v2124 = vadd.f32 %v1899, %v2123
  %v2125 = vpop.f32.mrb[0].mxu0
  %2126 = vmatprep.mubr.f32.mxu0 %v1021
  %2127 = vmatmul.mubr.f32.gmra.mrb[0].mxu0 %v1020
  %v2128 = vpop.f32.mrb[0].mxu0
  %v2129 = vadd.f32 %v1904, %v2128
  %v2130 = vpop.f32.mrb[0].mxu0
  %2131 = vmatprep.mubr.f32.mxu0 %v1033
  %2132 = vmatmul.mubr.f32.gmra.mrb[0].mxu0 %v1032
  %v2133 = vpop.f32.mrb[0].mxu0
  %v2134 = vadd.f32 %v1909, %v2133
  %v2135 = vpop.f32.mrb[0].mxu0
  %2136 = vmatprep.mubr.f32.mxu0 %v1045
  %2137 = vmatmul.mubr.f32.gmra.mrb[0].mxu0 %v1044
  %v2138 = vpop.f32.mrb[0].mxu0
  %v2139 = vadd.f32 %v1914, %v2138
  %v2140 = vpop.f32.mrb[0].mxu0
  %2141 = vdwg.mxu0
  %2142 = vmatprep.subr.mxu0 0.0
  %2143 = vmatpush1.msra.mxu0 %v1178
  %2144 = vmatprep.subr.mxu0 0.0
  %2145 = vmatpush1.msra.mxu0 %v1179
  %2146 = vmatprep.subr.mxu0 0.0
  %2147 = vmatpush1.msra.mxu0 %v1180
  %2148 = vmatprep.subr.mxu0 0.0
  %2149 = vmatpush1.msra.mxu0 %v1181
  %2150 = vmatprep.subr.mxu0 0.0
  %2151 = vmatpush1.msra.mxu0 %v1182
  %2152 = vmatprep.subr.mxu0 0.0
  %2153 = vmatpush1.msra.mxu0 %v1183
  %2154 = vmatprep.subr.mxu0 0.0
  %2155 = vmatpush1.msra.mxu0 %v1184
  %2156 = vmatprep.subr.mxu0 0.0
  %2157 = vmatpush1.msra.mxu0 %v1185
  %2158 = vmatprep.subr.mxu0 0.0
  %2159 = vmatpush1.msra.mxu0 %v1186
  %2160 = vmatprep.subr.mxu0 0.0
  %2161 = vmatpush1.msra.mxu0 %v1187
  %2162 = vmatprep.subr.mxu0 0.0
  %2163 = vmatpush1.msra.mxu0 %v1188
  %2164 = vmatprep.subr.mxu0 0.0
  %2165 = vmatpush1.msra.mxu0 %v1189
  %2166 = vmatprep.subr.mxu0 0.0
  %2167 = vmatpush1.msra.mxu0 %v1190
  %2168 = vmatprep.subr.mxu0 0.0
  %2169 = vmatpush1.msra.mxu0 %v1191
  %2170 = vmatprep.subr.mxu0 0.0
  %2171 = vmatpush1.msra.mxu0 %v1192
  %2172 = vmatprep.subr.mxu0 0.0
  %2173 = vmatpush1.msra.mxu0 %v1193
  %2174 = vmatprep.subr.mxu0 0.0
  %2175 = vmatpush1.msra.mxu0 %v1194
  %2176 = vmatprep.subr.mxu0 0.0
  %2177 = vmatpush1.msra.mxu0 %v1195
  %2178 = vmatprep.subr.mxu0 0.0
  %2179 = vmatpush1.msra.mxu0 %v1196
  %2180 = vmatprep.subr.mxu0 0.0
  %2181 = vmatpush1.msra.mxu0 %v1197
  %2182 = vmatprep.subr.mxu0 0.0
  %2183 = vmatpush1.msra.mxu0 %v1198
  %2184 = vmatprep.subr.mxu0 0.0
  %2185 = vmatpush1.msra.mxu0 %v1199
  %2186 = vmatprep.subr.mxu0 0.0
  %2187 = vmatpush1.msra.mxu0 %v1200
  %2188 = vmatprep.subr.mxu0 0.0
  %2189 = vmatpush1.msra.mxu0 %v1201
  %2190 = vmatprep.subr.mxu0 0.0
  %2191 = vmatpush1.msra.mxu0 %v1202
  %2192 = vmatprep.subr.mxu0 0.0
  %2193 = vmatpush1.msra.mxu0 %v1203
  %2194 = vmatprep.subr.mxu0 0.0
  %2195 = vmatpush1.msra.mxu0 %v1204
  %2196 = vmatprep.subr.mxu0 0.0
  %2197 = vmatpush1.msra.mxu0 %v1205
  %2198 = vmatprep.subr.mxu0 0.0
  %2199 = vmatpush1.msra.mxu0 %v1206
  %2200 = vmatprep.subr.mxu0 0.0
  %2201 = vmatpush1.msra.mxu0 %v1207
  %2202 = vmatprep.subr.mxu0 0.0
  %2203 = vmatpush1.msra.mxu0 %v1208
  %2204 = vmatprep.subr.mxu0 0.0
  %2205 = vmatpush1.msra.mxu0 %v1209
  %2206 = vmatprep.mubr.f32.mxu0 %v675
  %2207 = vmatmul.mubr.f32.gmra.mrb[0].mxu0 %v674
  %v2208 = vpop.f32.mrb[0].mxu0
  %v2209 = vadd.f32 %v1984, %v2208
  %v2210 = vpop.f32.mrb[0].mxu0
  %2211 = vmatprep.mubr.f32.mxu0 %v687
  %2212 = vmatmul.mubr.f32.gmra.mrb[0].mxu0 %v686
  %v2213 = vpop.f32.mrb[0].mxu0
  %v2214 = vadd.f32 %v1989, %v2213
  %v2215 = vpop.f32.mrb[0].mxu0
  %2216 = vmatprep.mubr.f32.mxu0 %v699
  %2217 = vmatmul.mubr.f32.gmra.mrb[0].mxu0 %v698
  %v2218 = vpop.f32.mrb[0].mxu0
  %v2219 = vadd.f32 %v1994, %v2218
  %v2220 = vpop.f32.mrb[0].mxu0
  %2221 = vmatprep.mubr.f32.mxu0 %v711
  %2222 = vmatmul.mubr.f32.gmra.mrb[0].mxu0 %v710
  %v2223 = vpop.f32.mrb[0].mxu0
  %v2224 = vadd.f32 %v1999, %v2223
  %v2225 = vpop.f32.mrb[0].mxu0
  %2226 = vmatprep.mubr.f32.mxu0 %v723
  %2227 = vmatmul.mubr.f32.gmra.mrb[0].mxu0 %v722
  %v2228 = vpop.f32.mrb[0].mxu0
  %v2229 = vadd.f32 %v2004, %v2228
  %v2230 = vpop.f32.mrb[0].mxu0
  %2231 = vmatprep.mubr.f32.mxu0 %v735
  %2232 = vmatmul.mubr.f32.gmra.mrb[0].mxu0 %v734
  %v2233 = vpop.f32.mrb[0].mxu0
  %v2234 = vadd.f32 %v2009, %v2233
  %v2235 = vpop.f32.mrb[0].mxu0
  %2236 = vmatprep.mubr.f32.mxu0 %v747
  %2237 = vmatmul.mubr.f32.gmra.mrb[0].mxu0 %v746
  %v2238 = vpop.f32.mrb[0].mxu0
  %v2239 = vadd.f32 %v2014, %v2238
  %v2240 = vpop.f32.mrb[0].mxu0
  %2241 = vmatprep.mubr.f32.mxu0 %v759
  %2242 = vmatmul.mubr.f32.gmra.mrb[0].mxu0 %v758
  %v2243 = vpop.f32.mrb[0].mxu0
  %v2244 = vadd.f32 %v2019, %v2243
  %v2245 = vpop.f32.mrb[0].mxu0
  %2246 = vmatprep.mubr.f32.mxu0 %v771
  %2247 = vmatmul.mubr.f32.gmra.mrb[0].mxu0 %v770
  %v2248 = vpop.f32.mrb[0].mxu0
  %v2249 = vadd.f32 %v2024, %v2248
  %v2250 = vpop.f32.mrb[0].mxu0
  %2251 = vmatprep.mubr.f32.mxu0 %v783
  %2252 = vmatmul.mubr.f32.gmra.mrb[0].mxu0 %v782
  %v2253 = vpop.f32.mrb[0].mxu0
  %v2254 = vadd.f32 %v2029, %v2253
  %v2255 = vpop.f32.mrb[0].mxu0
  %2256 = vmatprep.mubr.f32.mxu0 %v795
  %2257 = vmatmul.mubr.f32.gmra.mrb[0].mxu0 %v794
  %v2258 = vpop.f32.mrb[0].mxu0
  %v2259 = vadd.f32 %v2034, %v2258
  %v2260 = vpop.f32.mrb[0].mxu0
  %2261 = vmatprep.mubr.f32.mxu0 %v807
  %2262 = vmatmul.mubr.f32.gmra.mrb[0].mxu0 %v806
  %v2263 = vpop.f32.mrb[0].mxu0
  %v2264 = vadd.f32 %v2039, %v2263
  %v2265 = vpop.f32.mrb[0].mxu0
  %2266 = vmatprep.mubr.f32.mxu0 %v819
  %2267 = vmatmul.mubr.f32.gmra.mrb[0].mxu0 %v818
  %v2268 = vpop.f32.mrb[0].mxu0
  %v2269 = vadd.f32 %v2044, %v2268
  %v2270 = vpop.f32.mrb[0].mxu0
  %2271 = vmatprep.mubr.f32.mxu0 %v831
  %2272 = vmatmul.mubr.f32.gmra.mrb[0].mxu0 %v830
  %v2273 = vpop.f32.mrb[0].mxu0
  %v2274 = vadd.f32 %v2049, %v2273
  %v2275 = vpop.f32.mrb[0].mxu0
  %2276 = vmatprep.mubr.f32.mxu0 %v843
  %2277 = vmatmul.mubr.f32.gmra.mrb[0].mxu0 %v842
  %v2278 = vpop.f32.mrb[0].mxu0
  %v2279 = vadd.f32 %v2054, %v2278
  %v2280 = vpop.f32.mrb[0].mxu0
  %2281 = vmatprep.mubr.f32.mxu0 %v855
  %2282 = vmatmul.mubr.f32.gmra.mrb[0].mxu0 %v854
  %v2283 = vpop.f32.mrb[0].mxu0
  %v2284 = vadd.f32 %v2059, %v2283
  %v2285 = vpop.f32.mrb[0].mxu0
  %2286 = vmatprep.mubr.f32.mxu0 %v867
  %2287 = vmatmul.mubr.f32.gmra.mrb[0].mxu0 %v866
  %v2288 = vpop.f32.mrb[0].mxu0
  %v2289 = vadd.f32 %v2064, %v2288
  %v2290 = vpop.f32.mrb[0].mxu0
  %2291 = vmatprep.mubr.f32.mxu0 %v879
  %2292 = vmatmul.mubr.f32.gmra.mrb[0].mxu0 %v878
  %v2293 = vpop.f32.mrb[0].mxu0
  %v2294 = vadd.f32 %v2069, %v2293
  %v2295 = vpop.f32.mrb[0].mxu0
  %2296 = vmatprep.mubr.f32.mxu0 %v891
  %2297 = vmatmul.mubr.f32.gmra.mrb[0].mxu0 %v890
  %v2298 = vpop.f32.mrb[0].mxu0
  %v2299 = vadd.f32 %v2074, %v2298
  %v2300 = vpop.f32.mrb[0].mxu0
  %2301 = vmatprep.mubr.f32.mxu0 %v903
  %2302 = vmatmul.mubr.f32.gmra.mrb[0].mxu0 %v902
  %v2303 = vpop.f32.mrb[0].mxu0
  %v2304 = vadd.f32 %v2079, %v2303
  %v2305 = vpop.f32.mrb[0].mxu0
  %2306 = vmatprep.mubr.f32.mxu0 %v915
  %2307 = vmatmul.mubr.f32.gmra.mrb[0].mxu0 %v914
  %v2308 = vpop.f32.mrb[0].mxu0
  %v2309 = vadd.f32 %v2084, %v2308
  %v2310 = vpop.f32.mrb[0].mxu0
  %2311 = vmatprep.mubr.f32.mxu0 %v927
  %2312 = vmatmul.mubr.f32.gmra.mrb[0].mxu0 %v926
  %v2313 = vpop.f32.mrb[0].mxu0
  %v2314 = vadd.f32 %v2089, %v2313
  %v2315 = vpop.f32.mrb[0].mxu0
  %2316 = vmatprep.mubr.f32.mxu0 %v939
  %2317 = vmatmul.mubr.f32.gmra.mrb[0].mxu0 %v938
  %v2318 = vpop.f32.mrb[0].mxu0
  %v2319 = vadd.f32 %v2094, %v2318
  %v2320 = vpop.f32.mrb[0].mxu0
  %2321 = vmatprep.mubr.f32.mxu0 %v951
  %2322 = vmatmul.mubr.f32.gmra.mrb[0].mxu0 %v950
  %v2323 = vpop.f32.mrb[0].mxu0
  %v2324 = vadd.f32 %v2099, %v2323
  %v2325 = vpop.f32.mrb[0].mxu0
  %2326 = vmatprep.mubr.f32.mxu0 %v963
  %2327 = vmatmul.mubr.f32.gmra.mrb[0].mxu0 %v962
  %v2328 = vpop.f32.mrb[0].mxu0
  %v2329 = vadd.f32 %v2104, %v2328
  %v2330 = vpop.f32.mrb[0].mxu0
  %2331 = vmatprep.mubr.f32.mxu0 %v975
  %2332 = vmatmul.mubr.f32.gmra.mrb[0].mxu0 %v974
  %v2333 = vpop.f32.mrb[0].mxu0
  %v2334 = vadd.f32 %v2109, %v2333
  %v2335 = vpop.f32.mrb[0].mxu0
  %2336 = vmatprep.mubr.f32.mxu0 %v987
  %2337 = vmatmul.mubr.f32.gmra.mrb[0].mxu0 %v986
  %v2338 = vpop.f32.mrb[0].mxu0
  %v2339 = vadd.f32 %v2114, %v2338
  %v2340 = vpop.f32.mrb[0].mxu0
  %2341 = vmatprep.mubr.f32.mxu0 %v999
  %2342 = vmatmul.mubr.f32.gmra.mrb[0].mxu0 %v998
  %v2343 = vpop.f32.mrb[0].mxu0
  %v2344 = vadd.f32 %v2119, %v2343
  %v2345 = vpop.f32.mrb[0].mxu0
  %2346 = vmatprep.mubr.f32.mxu0 %v1011
  %2347 = vmatmul.mubr.f32.gmra.mrb[0].mxu0 %v1010
  %v2348 = vpop.f32.mrb[0].mxu0
  %v2349 = vadd.f32 %v2124, %v2348
  %v2350 = vpop.f32.mrb[0].mxu0
  %2351 = vmatprep.mubr.f32.mxu0 %v1023
  %2352 = vmatmul.mubr.f32.gmra.mrb[0].mxu0 %v1022
  %v2353 = vpop.f32.mrb[0].mxu0
  %v2354 = vadd.f32 %v2129, %v2353
  %v2355 = vpop.f32.mrb[0].mxu0
  %2356 = vmatprep.mubr.f32.mxu0 %v1035
  %2357 = vmatmul.mubr.f32.gmra.mrb[0].mxu0 %v1034
  %v2358 = vpop.f32.mrb[0].mxu0
  %v2359 = vadd.f32 %v2134, %v2358
  %v2360 = vpop.f32.mrb[0].mxu0
  %2361 = vmatprep.mubr.f32.mxu0 %v1047
  %2362 = vmatmul.mubr.f32.gmra.mrb[0].mxu0 %v1046
  %v2363 = vpop.f32.mrb[0].mxu0
  %v2364 = vadd.f32 %v2139, %v2363
  %v2365 = vpop.f32.mrb[0].mxu0
  %2366 = vdwg.mxu0
  %2367 = vmatprep.subr.mxu0 0.0
  %2368 = vmatpush1.msra.mxu0 %v1210
  %2369 = vmatprep.subr.mxu0 0.0
  %2370 = vmatpush1.msra.mxu0 %v1211
  %2371 = vmatprep.subr.mxu0 0.0
  %2372 = vmatpush1.msra.mxu0 %v1212
  %2373 = vmatprep.subr.mxu0 0.0
  %2374 = vmatpush1.msra.mxu0 %v1213
  %2375 = vmatprep.subr.mxu0 0.0
  %2376 = vmatpush1.msra.mxu0 %v1214
  %2377 = vmatprep.subr.mxu0 0.0
  %2378 = vmatpush1.msra.mxu0 %v1215
  %2379 = vmatprep.subr.mxu0 0.0
  %2380 = vmatpush1.msra.mxu0 %v1216
  %2381 = vmatprep.subr.mxu0 0.0
  %2382 = vmatpush1.msra.mxu0 %v1217
  %2383 = vmatprep.subr.mxu0 0.0
  %2384 = vmatpush1.msra.mxu0 %v1218
  %2385 = vmatprep.subr.mxu0 0.0
  %2386 = vmatpush1.msra.mxu0 %v1219
  %2387 = vmatprep.subr.mxu0 0.0
  %2388 = vmatpush1.msra.mxu0 %v1220
  %2389 = vmatprep.subr.mxu0 0.0
  %2390 = vmatpush1.msra.mxu0 %v1221
  %2391 = vmatprep.subr.mxu0 0.0
  %2392 = vmatpush1.msra.mxu0 %v1222
  %2393 = vmatprep.subr.mxu0 0.0
  %2394 = vmatpush1.msra.mxu0 %v1223
  %2395 = vmatprep.subr.mxu0 0.0
  %2396 = vmatpush1.msra.mxu0 %v1224
  %2397 = vmatprep.subr.mxu0 0.0
  %2398 = vmatpush1.msra.mxu0 %v1225
  %2399 = vmatprep.subr.mxu0 0.0
  %2400 = vmatpush1.msra.mxu0 %v1226
  %2401 = vmatprep.subr.mxu0 0.0
  %2402 = vmatpush1.msra.mxu0 %v1227
  %2403 = vmatprep.subr.mxu0 0.0
  %2404 = vmatpush1.msra.mxu0 %v1228
  %2405 = vmatprep.subr.mxu0 0.0
  %2406 = vmatpush1.msra.mxu0 %v1229
  %2407 = vmatprep.subr.mxu0 0.0
  %2408 = vmatpush1.msra.mxu0 %v1230
  %2409 = vmatprep.subr.mxu0 0.0
  %2410 = vmatpush1.msra.mxu0 %v1231
  %2411 = vmatprep.subr.mxu0 0.0
  %2412 = vmatpush1.msra.mxu0 %v1232
  %2413 = vmatprep.subr.mxu0 0.0
  %2414 = vmatpush1.msra.mxu0 %v1233
  %2415 = vmatprep.subr.mxu0 0.0
  %2416 = vmatpush1.msra.mxu0 %v1234
  %2417 = vmatprep.subr.mxu0 0.0
  %2418 = vmatpush1.msra.mxu0 %v1235
  %2419 = vmatprep.subr.mxu0 0.0
  %2420 = vmatpush1.msra.mxu0 %v1236
  %2421 = vmatprep.subr.mxu0 0.0
  %2422 = vmatpush1.msra.mxu0 %v1237
  %2423 = vmatprep.subr.mxu0 0.0
  %2424 = vmatpush1.msra.mxu0 %v1238
  %2425 = vmatprep.subr.mxu0 0.0
  %2426 = vmatpush1.msra.mxu0 %v1239
  %2427 = vmatprep.subr.mxu0 0.0
  %2428 = vmatpush1.msra.mxu0 %v1240
  %2429 = vmatprep.subr.mxu0 0.0
  %2430 = vmatpush1.msra.mxu0 %v1241
  %2431 = vmatprep.mubr.f32.mxu0 %v677
  %2432 = vmatmul.mubr.f32.gmra.mrb[0].mxu0 %v676
  %v2433 = vpop.f32.mrb[0].mxu0
  %v2434 = vadd.f32 %v2209, %v2433
  %v2435 = vpop.f32.mrb[0].mxu0
  %2436 = vmatprep.mubr.f32.mxu0 %v689
  %2437 = vmatmul.mubr.f32.gmra.mrb[0].mxu0 %v688
  %v2438 = vpop.f32.mrb[0].mxu0
  %v2439 = vadd.f32 %v2214, %v2438
  %v2440 = vpop.f32.mrb[0].mxu0
  %2441 = vmatprep.mubr.f32.mxu0 %v701
  %2442 = vmatmul.mubr.f32.gmra.mrb[0].mxu0 %v700
  %v2443 = vpop.f32.mrb[0].mxu0
  %v2444 = vadd.f32 %v2219, %v2443
  %v2445 = vpop.f32.mrb[0].mxu0
  %2446 = vmatprep.mubr.f32.mxu0 %v713
  %2447 = vmatmul.mubr.f32.gmra.mrb[0].mxu0 %v712
  %v2448 = vpop.f32.mrb[0].mxu0
  %v2449 = vadd.f32 %v2224, %v2448
  %v2450 = vpop.f32.mrb[0].mxu0
  %2451 = vmatprep.mubr.f32.mxu0 %v725
  %2452 = vmatmul.mubr.f32.gmra.mrb[0].mxu0 %v724
  %v2453 = vpop.f32.mrb[0].mxu0
  %v2454 = vadd.f32 %v2229, %v2453
  %v2455 = vpop.f32.mrb[0].mxu0
  %2456 = vmatprep.mubr.f32.mxu0 %v737
  %2457 = vmatmul.mubr.f32.gmra.mrb[0].mxu0 %v736
  %v2458 = vpop.f32.mrb[0].mxu0
  %v2459 = vadd.f32 %v2234, %v2458
  %v2460 = vpop.f32.mrb[0].mxu0
  %2461 = vmatprep.mubr.f32.mxu0 %v749
  %2462 = vmatmul.mubr.f32.gmra.mrb[0].mxu0 %v748
  %v2463 = vpop.f32.mrb[0].mxu0
  %v2464 = vadd.f32 %v2239, %v2463
  %v2465 = vpop.f32.mrb[0].mxu0
  %2466 = vmatprep.mubr.f32.mxu0 %v761
  %2467 = vmatmul.mubr.f32.gmra.mrb[0].mxu0 %v760
  %v2468 = vpop.f32.mrb[0].mxu0
  %v2469 = vadd.f32 %v2244, %v2468
  %v2470 = vpop.f32.mrb[0].mxu0
  %2471 = vmatprep.mubr.f32.mxu0 %v773
  %2472 = vmatmul.mubr.f32.gmra.mrb[0].mxu0 %v772
  %v2473 = vpop.f32.mrb[0].mxu0
  %v2474 = vadd.f32 %v2249, %v2473
  %v2475 = vpop.f32.mrb[0].mxu0
  %2476 = vmatprep.mubr.f32.mxu0 %v785
  %2477 = vmatmul.mubr.f32.gmra.mrb[0].mxu0 %v784
  %v2478 = vpop.f32.mrb[0].mxu0
  %v2479 = vadd.f32 %v2254, %v2478
  %v2480 = vpop.f32.mrb[0].mxu0
  %2481 = vmatprep.mubr.f32.mxu0 %v797
  %2482 = vmatmul.mubr.f32.gmra.mrb[0].mxu0 %v796
  %v2483 = vpop.f32.mrb[0].mxu0
  %v2484 = vadd.f32 %v2259, %v2483
  %v2485 = vpop.f32.mrb[0].mxu0
  %2486 = vmatprep.mubr.f32.mxu0 %v809
  %2487 = vmatmul.mubr.f32.gmra.mrb[0].mxu0 %v808
  %v2488 = vpop.f32.mrb[0].mxu0
  %v2489 = vadd.f32 %v2264, %v2488
  %v2490 = vpop.f32.mrb[0].mxu0
  %2491 = vmatprep.mubr.f32.mxu0 %v821
  %2492 = vmatmul.mubr.f32.gmra.mrb[0].mxu0 %v820
  %v2493 = vpop.f32.mrb[0].mxu0
  %v2494 = vadd.f32 %v2269, %v2493
  %v2495 = vpop.f32.mrb[0].mxu0
  %2496 = vmatprep.mubr.f32.mxu0 %v833
  %2497 = vmatmul.mubr.f32.gmra.mrb[0].mxu0 %v832
  %v2498 = vpop.f32.mrb[0].mxu0
  %v2499 = vadd.f32 %v2274, %v2498
  %v2500 = vpop.f32.mrb[0].mxu0
  %2501 = vmatprep.mubr.f32.mxu0 %v845
  %2502 = vmatmul.mubr.f32.gmra.mrb[0].mxu0 %v844
  %v2503 = vpop.f32.mrb[0].mxu0
  %v2504 = vadd.f32 %v2279, %v2503
  %v2505 = vpop.f32.mrb[0].mxu0
  %2506 = vmatprep.mubr.f32.mxu0 %v857
  %2507 = vmatmul.mubr.f32.gmra.mrb[0].mxu0 %v856
  %v2508 = vpop.f32.mrb[0].mxu0
  %v2509 = vadd.f32 %v2284, %v2508
  %v2510 = vpop.f32.mrb[0].mxu0
  %2511 = vmatprep.mubr.f32.mxu0 %v869
  %2512 = vmatmul.mubr.f32.gmra.mrb[0].mxu0 %v868
  %v2513 = vpop.f32.mrb[0].mxu0
  %v2514 = vadd.f32 %v2289, %v2513
  %v2515 = vpop.f32.mrb[0].mxu0
  %2516 = vmatprep.mubr.f32.mxu0 %v881
  %2517 = vmatmul.mubr.f32.gmra.mrb[0].mxu0 %v880
  %v2518 = vpop.f32.mrb[0].mxu0
  %v2519 = vadd.f32 %v2294, %v2518
  %v2520 = vpop.f32.mrb[0].mxu0
  %2521 = vmatprep.mubr.f32.mxu0 %v893
  %2522 = vmatmul.mubr.f32.gmra.mrb[0].mxu0 %v892
  %v2523 = vpop.f32.mrb[0].mxu0
  %v2524 = vadd.f32 %v2299, %v2523
  %v2525 = vpop.f32.mrb[0].mxu0
  %2526 = vmatprep.mubr.f32.mxu0 %v905
  %2527 = vmatmul.mubr.f32.gmra.mrb[0].mxu0 %v904
  %v2528 = vpop.f32.mrb[0].mxu0
  %v2529 = vadd.f32 %v2304, %v2528
  %v2530 = vpop.f32.mrb[0].mxu0
  %2531 = vmatprep.mubr.f32.mxu0 %v917
  %2532 = vmatmul.mubr.f32.gmra.mrb[0].mxu0 %v916
  %v2533 = vpop.f32.mrb[0].mxu0
  %v2534 = vadd.f32 %v2309, %v2533
  %v2535 = vpop.f32.mrb[0].mxu0
  %2536 = vmatprep.mubr.f32.mxu0 %v929
  %2537 = vmatmul.mubr.f32.gmra.mrb[0].mxu0 %v928
  %v2538 = vpop.f32.mrb[0].mxu0
  %v2539 = vadd.f32 %v2314, %v2538
  %v2540 = vpop.f32.mrb[0].mxu0
  %2541 = vmatprep.mubr.f32.mxu0 %v941
  %2542 = vmatmul.mubr.f32.gmra.mrb[0].mxu0 %v940
  %v2543 = vpop.f32.mrb[0].mxu0
  %v2544 = vadd.f32 %v2319, %v2543
  %v2545 = vpop.f32.mrb[0].mxu0
  %2546 = vmatprep.mubr.f32.mxu0 %v953
  %2547 = vmatmul.mubr.f32.gmra.mrb[0].mxu0 %v952
  %v2548 = vpop.f32.mrb[0].mxu0
  %v2549 = vadd.f32 %v2324, %v2548
  %v2550 = vpop.f32.mrb[0].mxu0
  %2551 = vmatprep.mubr.f32.mxu0 %v965
  %2552 = vmatmul.mubr.f32.gmra.mrb[0].mxu0 %v964
  %v2553 = vpop.f32.mrb[0].mxu0
  %v2554 = vadd.f32 %v2329, %v2553
  %v2555 = vpop.f32.mrb[0].mxu0
  %2556 = vmatprep.mubr.f32.mxu0 %v977
  %2557 = vmatmul.mubr.f32.gmra.mrb[0].mxu0 %v976
  %v2558 = vpop.f32.mrb[0].mxu0
  %v2559 = vadd.f32 %v2334, %v2558
  %v2560 = vpop.f32.mrb[0].mxu0
  %2561 = vmatprep.mubr.f32.mxu0 %v989
  %2562 = vmatmul.mubr.f32.gmra.mrb[0].mxu0 %v988
  %v2563 = vpop.f32.mrb[0].mxu0
  %v2564 = vadd.f32 %v2339, %v2563
  %v2565 = vpop.f32.mrb[0].mxu0
  %2566 = vmatprep.mubr.f32.mxu0 %v1001
  %2567 = vmatmul.mubr.f32.gmra.mrb[0].mxu0 %v1000
  %v2568 = vpop.f32.mrb[0].mxu0
  %v2569 = vadd.f32 %v2344, %v2568
  %v2570 = vpop.f32.mrb[0].mxu0
  %2571 = vmatprep.mubr.f32.mxu0 %v1013
  %2572 = vmatmul.mubr.f32.gmra.mrb[0].mxu0 %v1012
  %v2573 = vpop.f32.mrb[0].mxu0
  %v2574 = vadd.f32 %v2349, %v2573
  %v2575 = vpop.f32.mrb[0].mxu0
  %2576 = vmatprep.mubr.f32.mxu0 %v1025
  %2577 = vmatmul.mubr.f32.gmra.mrb[0].mxu0 %v1024
  %v2578 = vpop.f32.mrb[0].mxu0
  %v2579 = vadd.f32 %v2354, %v2578
  %v2580 = vpop.f32.mrb[0].mxu0
  %2581 = vmatprep.mubr.f32.mxu0 %v1037
  %2582 = vmatmul.mubr.f32.gmra.mrb[0].mxu0 %v1036
  %v2583 = vpop.f32.mrb[0].mxu0
  %v2584 = vadd.f32 %v2359, %v2583
  %v2585 = vpop.f32.mrb[0].mxu0
  %2586 = vmatprep.mubr.f32.mxu0 %v1049
  %2587 = vmatmul.mubr.f32.gmra.mrb[0].mxu0 %v1048
  %v2588 = vpop.f32.mrb[0].mxu0
  %v2589 = vadd.f32 %v2364, %v2588
  %v2590 = vpop.f32.mrb[0].mxu0
  %2591 = vdwg.mxu0
  %vm2592 = vcmask 400384
  %2593 = vst.msk [vmem:[%s3] sm:$0xff] %vm2592, %v2434
  %2594 = vst.msk [vmem:[%s3 + $0x8] sm:$0xff] %vm2592, %v2439
  %2595 = vst.msk [vmem:[%s3 + $0x10] sm:$0xff] %vm2592, %v2444
  %2596 = vst.msk [vmem:[%s3 + $0x18] sm:$0xff] %vm2592, %v2449
  %2597 = vst.msk [vmem:[%s3 + $0x20] sm:$0xff] %vm2592, %v2454
  %2598 = vst.msk [vmem:[%s3 + $0x28] sm:$0xff] %vm2592, %v2459
  %2599 = vst.msk [vmem:[%s3 + $0x30] sm:$0xff] %vm2592, %v2464
  %2600 = vst.msk [vmem:[%s3 + $0x38] sm:$0xff] %vm2592, %v2469
  %2601 = vst.msk [vmem:[%s3 + $0x40] sm:$0xff] %vm2592, %v2474
  %2602 = vst.msk [vmem:[%s3 + $0x48] sm:$0xff] %vm2592, %v2479
  %2603 = vst.msk [vmem:[%s3 + $0x50] sm:$0xff] %vm2592, %v2484
  %2604 = vst.msk [vmem:[%s3 + $0x58] sm:$0xff] %vm2592, %v2489
  %2605 = vst.msk [vmem:[%s3 + $0x60] sm:$0xff] %vm2592, %v2494
  %2606 = vst.msk [vmem:[%s3 + $0x68] sm:$0xff] %vm2592, %v2499
  %2607 = vst.msk [vmem:[%s3 + $0x70] sm:$0xff] %vm2592, %v2504
  %2608 = vst.msk [vmem:[%s3 + $0x78] sm:$0xff] %vm2592, %v2509
  %2609 = vst.msk [vmem:[%s3 + $0x80] sm:$0xff] %vm2592, %v2514
  %2610 = vst.msk [vmem:[%s3 + $0x88] sm:$0xff] %vm2592, %v2519
  %2611 = vst.msk [vmem:[%s3 + $0x90] sm:$0xff] %vm2592, %v2524
  %2612 = vst.msk [vmem:[%s3 + $0x98] sm:$0xff] %vm2592, %v2529
  %2613 = vst.msk [vmem:[%s3 + $0xa0] sm:$0xff] %vm2592, %v2534
  %2614 = vst.msk [vmem:[%s3 + $0xa8] sm:$0xff] %vm2592, %v2539
  %2615 = vst.msk [vmem:[%s3 + $0xb0] sm:$0xff] %vm2592, %v2544
  %2616 = vst.msk [vmem:[%s3 + $0xb8] sm:$0xff] %vm2592, %v2549
  %2617 = vst.msk [vmem:[%s3 + $0xc0] sm:$0xff] %vm2592, %v2554
  %2618 = vst.msk [vmem:[%s3 + $0xc8] sm:$0xff] %vm2592, %v2559
  %2619 = vst.msk [vmem:[%s3 + $0xd0] sm:$0xff] %vm2592, %v2564
  %2620 = vst.msk [vmem:[%s3 + $0xd8] sm:$0xff] %vm2592, %v2569
  %2621 = vst.msk [vmem:[%s3 + $0xe0] sm:$0xff] %vm2592, %v2574
  %2622 = vst.msk [vmem:[%s3 + $0xe8] sm:$0xff] %vm2592, %v2579
  %2623 = vst.msk [vmem:[%s3 + $0xf0] sm:$0xff] %vm2592, %v2584
  %2624 = vst.msk [vmem:[%s3 + $0xf8] sm:$0xff] %vm2592, %v2589
  // Predicated region
  $region14: #{se_gated_conv1x1.1} parent=0 // pred_check
    _
  $region15: #{se_gated_conv1x1.1} parent=0 // pred_check_branch
    %2626 = sbr.rel (0) target = $region17
  $region16: #{se_gated_conv1x1.1} parent=0 // pred_region
    _
  $region17: #{se_gated_conv1x1.1} parent=0 // pred_fallthru
    _
  // Predicated region
  $region18: #{se_gated_conv1x1.1} parent=0 // pred_check
    _
  $region19: #{se_gated_conv1x1.1} parent=0 // pred_check_branch
    %2628 = sbr.rel (0) target = $region21
  $region20: #{se_gated_conv1x1.1} parent=0 // pred_region
    _
  $region21: #{se_gated_conv1x1.1} parent=0 // pred_fallthru
    _

</llo_original>
